<compile_context>
chip_gen: v6e
topology: v6e:2x2x1
jax: 0.10.0
libtpu: 0.0.40
codegen_flags: <defaults>
</compile_context>

<pallas_src>
import functools

import jax
import jax.numpy as jnp
from jax.experimental import pallas as pl
from jax.experimental.pallas import tpu as pltpu

LANE = 128


def _round_up(x, m):
    return ((x + m - 1) // m) * m


def _mlp_kernel(h_depth, h_dim, eps, *refs):
    """Fused MLP forward for one batch tile.

    refs = (x_ref, w0_ref, [wh_ref], w_out_ref, vec_ref, out_ref)
      x_ref     : [TB, v_pad]                    (v_dim zero-padded to lane width)
      w0_ref    : [v_pad, h_pad]
      wh_ref    : [h_depth, h_pad, h_pad]        (only present if h_depth > 0)
      w_out_ref : [h_pad, c_pad]
      vec_ref   : [3 + 3*h_depth, W]  (f32)      W = max(h_pad, c_pad), packed rows:
                    row 0              : b0
                    rows 1+3d..3+3d    : b_d, gamma_d, beta_d
                    row 1+3*h_depth    : b_out
                    row 2+3*h_depth    : lane mask (1.0 on the first h_dim lanes)
      out_ref   : [TB, c_pad]
    """
    x_ref, w0_ref = refs[0], refs[1]
    if h_depth > 0:
        wh_ref, w_out_ref, vec_ref, out_ref = refs[2], refs[3], refs[4], refs[5]
    else:
        wh_ref = None
        w_out_ref, vec_ref, out_ref = refs[2], refs[3], refs[4]

    h_pad = w0_ref.shape[-1]
    c_pad = out_ref.shape[-1]

    vecs = vec_ref[...]                                   # f32, one small load
    mask = vecs[2 + 3 * h_depth:3 + 3 * h_depth, :h_pad]  # [1, h_pad] lane mask
    inv_h = 1.0 / float(h_dim)

    def to_mxu(a, w):
        return a if a.dtype == w.dtype else a.astype(w.dtype)

    # ---- Layer 0: Linear + ReLU (Dropout == identity in eval mode) ----
    w0 = w0_ref[...]
    h = jnp.dot(to_mxu(x_ref[...], w0), w0, preferred_element_type=jnp.float32)
    h = jnp.maximum(h + vecs[0:1, :h_pad], 0.0)

    # ---- Hidden blocks: Linear + LayerNorm + ReLU (+ identity Dropout) ----
    for d in range(h_depth):
        w = wh_ref[d]
        b = vecs[1 + 3 * d:2 + 3 * d, :h_pad]
        gamma = vecs[2 + 3 * d:3 + 3 * d, :h_pad]
        beta = vecs[3 + 3 * d:4 + 3 * d, :h_pad]

        h = jnp.dot(to_mxu(h, w), w, preferred_element_type=jnp.float32) + b
        # LayerNorm over the real h_dim lanes only. Padded lanes of h are zero
        # after the Linear (zero weight cols / bias), but (h - mean) is not,
        # hence the lane mask before the variance reduction (keeps the stable
        # centered form and exact h_dim statistics).
        mean = jnp.sum(h, axis=-1, keepdims=True) * inv_h
        centered = (h - mean) * mask
        var = jnp.sum(centered * centered, axis=-1, keepdims=True) * inv_h
        h = centered * jax.lax.rsqrt(var + eps)
        h = jnp.maximum(h * gamma + beta, 0.0)   # padded lanes: 0*gamma(0)+beta(0)=0

    # ---- Output head (lane-dense, padded class dim) ----
    w_out = w_out_ref[...]
    y = jnp.dot(to_mxu(h, w_out), w_out, preferred_element_type=jnp.float32)
    y = y + vecs[1 + 3 * h_depth:2 + 3 * h_depth, :c_pad]
    out_ref[...] = y.astype(out_ref.dtype)


def pack_params(params, *, h_depth, h_dim, v_dim, class_num,
                weight_dtype=jnp.bfloat16):
    """Pack the flat PyTorch-style param list for the kernel.

    Input order: w0, b0, [w_d, b_d, gamma_d, beta_d]*h_depth, w_out, b_out.
    Weights are zero-padded to 128-multiples and cast to `weight_dtype`;
    biases/gamma/beta (+ the LayerNorm lane mask) stay f32 in one packed array.
    """
    v_pad = _round_up(max(v_dim, 1), LANE)
    h_pad = _round_up(max(h_dim, 1), LANE)
    c_pad = _round_up(max(class_num, 1), LANE)
    width = max(h_pad, c_pad)

    def pad_mat(w, rows, cols):
        w = jnp.asarray(w, jnp.float32)
        w = jnp.pad(w, ((0, rows - w.shape[0]), (0, cols - w.shape[1])))
        return w.astype(weight_dtype)

    def pad_row(v):
        v = jnp.asarray(v, jnp.float32).reshape(1, -1)
        return jnp.pad(v, ((0, 0), (0, width - v.shape[1])))

    w0, b0 = params[0], params[1]
    rows = [pad_row(b0)]
    wh = []
    idx = 2
    for _ in range(h_depth):
        wh.append(pad_mat(params[idx], h_pad, h_pad))
        rows += [pad_row(params[idx + 1]), pad_row(params[idx + 2]),
                 pad_row(params[idx + 3])]
        idx += 4
    w_out, b_out = params[idx], params[idx + 1]
    rows.append(pad_row(b_out))
    rows.append(pad_row(jnp.ones((1, h_dim), jnp.float32)))  # LN lane mask

    return dict(
        w0=pad_mat(w0, v_pad, h_pad),
        wh=jnp.stack(wh, axis=0) if h_depth > 0 else None,
        w_out=pad_mat(w_out, h_pad, c_pad),
        vecs=jnp.concatenate(rows, axis=0),   # f32
        v_pad=v_pad, h_pad=h_pad, c_pad=c_pad,
    )


def nn_forward(x, packed, *, h_depth, h_dim, class_num, eps=1e-5, block_b=512):
    """Run the fused MLP. Batch is tiled on a 'parallel' grid; weights stay resident."""
    B, v_dim = x.shape
    v_pad, h_pad, c_pad = packed["v_pad"], packed["h_pad"], packed["c_pad"]
    out_dtype = x.dtype
    w_dtype = packed["w0"].dtype

    # Batch tiling: big B -> TB=block_b (amortize serial grid steps on v5e/v6e);
    # moderate B -> split into 2 tiles so v7x's 2 TensorCores both get work.
    if B > block_b:
        TB = block_b
    elif B >= 16:
        TB = _round_up(pl.cdiv(B, 2), 8)
    else:
        TB = _round_up(B, 8)
    B_pad = _round_up(B, TB)
    grid = (B_pad // TB,)

    # Cast x once in the wrapper (halves recurring x DMA for bf16 weights and
    # removes the in-kernel cast for the first matmul), then pad to lane width.
    x_in = x.astype(w_dtype)
    if B_pad != B or v_pad != v_dim:
        x_in = jnp.pad(x_in, ((0, B_pad - B), (0, v_pad - v_dim)))

    # Explicit VMEM budget: resident (single-buffered) weights + vecs,
    # double-buffered x/out tiles, a few live f32 intermediates, +30% headroom.
    wb = jnp.dtype(w_dtype).itemsize
    ob = jnp.dtype(out_dtype).itemsize
    weight_bytes = packed["w0"].size * wb + packed["w_out"].size * wb
    if packed["wh"] is not None:
        weight_bytes += packed["wh"].size * wb
    needed = (weight_bytes + packed["vecs"].size * 4
              + 2 * TB * v_pad * wb
              + 2 * TB * c_pad * ob
              + 4 * TB * max(v_pad, h_pad, c_pad) * 4)
    vmem_limit = int(min(max(needed * 1.3, 32 * 1024 * 1024), 64 * 1024 * 1024))

    kernel = functools.partial(_mlp_kernel, h_depth, h_dim, eps)
    out_spec = pl.BlockSpec((TB, c_pad), lambda i: (i, 0))

    def run(single_buffer):
        kw = dict(pipeline_mode=pl.Buffered(1)) if single_buffer else {}
        operands = [x_in, packed["w0"]]
        in_specs = [pl.BlockSpec((TB, v_pad), lambda i: (i, 0)),
                    pl.BlockSpec(packed["w0"].shape, lambda i: (0, 0), **kw)]
        if h_depth > 0:
            operands.append(packed["wh"])
            in_specs.append(
                pl.BlockSpec(packed["wh"].shape, lambda i: (0, 0, 0), **kw))
        operands += [packed["w_out"], packed["vecs"]]
        in_specs += [pl.BlockSpec(packed["w_out"].shape, lambda i: (0, 0), **kw),
                     pl.BlockSpec(packed["vecs"].shape, lambda i: (0, 0), **kw)]
        return pl.pallas_call(
            kernel,
            out_shape=jax.ShapeDtypeStruct((B_pad, c_pad), out_dtype),
            grid=grid,
            in_specs=in_specs,
            out_specs=out_spec,
            compiler_params=pltpu.CompilerParams(
                dimension_semantics=("parallel",),
                vmem_limit_bytes=vmem_limit),
        )(*operands)

    try:
        out_padded = run(single_buffer=True)
    except Exception:
        # Fallback for jax versions without pl.Buffered single-buffering support.
        out_padded = run(single_buffer=False)

    return out_padded[:B, :class_num]


def init_params(key, v_dim, h_dim, h_depth, class_num, dtype=jnp.float32):
    """Deterministic PyTorch-like init. Flat list: w0, b0, [w,b,g,beta]*depth, w_out, b_out."""
    params = []

    def linear(key, fan_in, fan_out):
        kw, kb = jax.random.split(key)
        bound = 1.0 / jnp.sqrt(fan_in)
        w = jax.random.uniform(kw, (fan_in, fan_out), dtype, -bound, bound)
        b = jax.random.uniform(kb, (1, fan_out), dtype, -bound, bound)
        return w, b

    keys = jax.random.split(key, h_depth + 2)
    w0, b0 = linear(keys[0], v_dim, h_dim)
    params += [w0, b0]
    for d in range(h_depth):
        w, b = linear(keys[1 + d], h_dim, h_dim)
        params += [w, b, jnp.ones((1, h_dim), dtype), jnp.zeros((1, h_dim), dtype)]
    w_out, b_out = linear(keys[-1], h_dim, class_num)
    params += [w_out, b_out]
    return params


def nn_forward_ref(x, params, *, h_depth, eps=1e-5):
    """Pure-JAX reference for correctness checking."""
    idx = 0
    h = x @ params[idx] + params[idx + 1]
    idx += 2
    h = jnp.maximum(h, 0.0)
    for _ in range(h_depth):
        w, b, g, be = params[idx], params[idx + 1], params[idx + 2], params[idx + 3]
        idx += 4
        h = h @ w + b
        mean = jnp.mean(h, axis=-1, keepdims=True)
        var = jnp.mean((h - mean) ** 2, axis=-1, keepdims=True)
        h = (h - mean) / jnp.sqrt(var + eps)
        h = h * g + be
        h = jnp.maximum(h, 0.0)
    return h @ params[idx] + params[idx + 1]


if __name__ == "__main__":
    # configs: v_dim=16, h_dim=32, h_depth=2, class_num=4, dropout_rate=0.1 (eval mode)
    B, V_DIM, H_DIM, H_DEPTH, CLASS_NUM = 8, 16, 32, 2, 4

    key = jax.random.PRNGKey(0)
    kx, kp = jax.random.split(key)
    x = jax.random.normal(kx, (B, V_DIM), jnp.float32)
    params = init_params(kp, V_DIM, H_DIM, H_DEPTH, CLASS_NUM)
    ref = nn_forward_ref(x, params, h_depth=H_DEPTH)

    # f32 weights: strict check against the pure-JAX reference.
    packed_f32 = pack_params(params, h_depth=H_DEPTH, h_dim=H_DIM, v_dim=V_DIM,
                             class_num=CLASS_NUM, weight_dtype=jnp.float32)
    out_f32 = nn_forward(x, packed_f32, h_depth=H_DEPTH, h_dim=H_DIM,
                         class_num=CLASS_NUM)
    out_f32 = jax.block_until_ready(out_f32)
    assert out_f32.shape == (B, CLASS_NUM)
    assert jnp.allclose(out_f32, ref, atol=1e-5, rtol=1e-5), "f32 mismatch vs reference"

    # bf16 weights (production path): halves weight DMA/VMEM, doubles MXU rate.
    packed_bf16 = pack_params(params, h_depth=H_DEPTH, h_dim=H_DIM, v_dim=V_DIM,
                              class_num=CLASS_NUM, weight_dtype=jnp.bfloat16)
    out_bf16 = nn_forward(x, packed_bf16, h_depth=H_DEPTH, h_dim=H_DIM,
                          class_num=CLASS_NUM)
    out_bf16 = jax.block_until_ready(out_bf16)
    assert out_bf16.shape == (B, CLASS_NUM)
    assert jnp.allclose(out_bf16, ref, atol=1e-1, rtol=1e-1), "bf16 mismatch vs reference"

    print("KERNEL_OK")
</pallas_src>

<mosaic_0001>
module attributes {stable_mosaic.version = 11 : i64} {
  func.func @_mlp_kernel(%arg0: i32, %arg1: memref<8x128xf32, #tpu.memory_space<vmem>>, %arg2: memref<128x128xf32, #tpu.memory_space<vmem>>, %arg3: memref<2x128x128xf32, #tpu.memory_space<vmem>>, %arg4: memref<128x128xf32, #tpu.memory_space<vmem>>, %arg5: memref<9x128xf32, #tpu.memory_space<vmem>>, %arg6: memref<8x128xf32, #tpu.memory_space<vmem>>) attributes {dimension_semantics = [#tpu.dimension_semantics<parallel>], iteration_bounds = array<i64: 1>, scalar_prefetch = 0 : i64, scratch_operands = 0 : i64, tpu.core_type = #tpu.core_type<tc>, window_params = [{transform_indices = @transform_0, window_bounds = array<i64: 8, 128>}, {pipeline_mode = #tpu.pipeline_mode<synchronous>, transform_indices = @transform_1, window_bounds = array<i64: 128, 128>}, {pipeline_mode = #tpu.pipeline_mode<synchronous>, transform_indices = @transform_2, window_bounds = array<i64: 2, 128, 128>}, {pipeline_mode = #tpu.pipeline_mode<synchronous>, transform_indices = @transform_3, window_bounds = array<i64: 128, 128>}, {pipeline_mode = #tpu.pipeline_mode<synchronous>, transform_indices = @transform_4, window_bounds = array<i64: 9, 128>}, {transform_indices = @transform_5, window_bounds = array<i64: 8, 128>}]} {
    %c0 = arith.constant 0 : index
    %c0_0 = arith.constant 0 : index
    %0 = vector.load %arg5[%c0, %c0_0] : memref<9x128xf32, #tpu.memory_space<vmem>>, vector<9x128xf32>
    %1 = vector.extract_strided_slice %0 {offsets = [8, 0], sizes = [1, 128], strides = [1, 1]} : vector<9x128xf32> to vector<1x128xf32>
    %c0_1 = arith.constant 0 : index
    %c0_2 = arith.constant 0 : index
    %2 = vector.load %arg2[%c0_1, %c0_2] : memref<128x128xf32, #tpu.memory_space<vmem>>, vector<128x128xf32>
    %c0_3 = arith.constant 0 : index
    %c0_4 = arith.constant 0 : index
    %3 = vector.load %arg1[%c0_3, %c0_4] : memref<8x128xf32, #tpu.memory_space<vmem>>, vector<8x128xf32>
    %cst = arith.constant dense<0.000000e+00> : vector<8x128xf32>
    %4 = tpu.matmul %3, %2, %cst {dimension_numbers = #tpu.dot_dimension_numbers<[1], [0], [0], [1], [0, 0, 1, 1], [], []>} : vector<8x128xf32>, vector<128x128xf32>, vector<8x128xf32> -> vector<8x128xf32>
    %5 = vector.extract_strided_slice %0 {offsets = [0, 0], sizes = [1, 128], strides = [1, 1]} : vector<9x128xf32> to vector<1x128xf32>
    %6 = vector.broadcast %5 : vector<1x128xf32> to vector<8x128xf32>
    %7 = arith.addf %4, %6 : vector<8x128xf32>
    %cst_5 = arith.constant 0.000000e+00 : f32
    %8 = vector.broadcast %cst_5 : f32 to vector<8x128xf32>
    %9 = arith.maximumf %7, %8 : vector<8x128xf32>
    %c0_6 = arith.constant 0 : index
    %c0_7 = arith.constant 0 : index
    %c0_8 = arith.constant 0 : index
    %10 = vector.load %arg3[%c0_6, %c0_7, %c0_8] : memref<2x128x128xf32, #tpu.memory_space<vmem>>, vector<1x128x128xf32>
    %11 = vector.shape_cast %10 : vector<1x128x128xf32> to vector<128x128xf32>
    %12 = vector.extract_strided_slice %0 {offsets = [1, 0], sizes = [1, 128], strides = [1, 1]} : vector<9x128xf32> to vector<1x128xf32>
    %13 = vector.extract_strided_slice %0 {offsets = [2, 0], sizes = [1, 128], strides = [1, 1]} : vector<9x128xf32> to vector<1x128xf32>
    %14 = vector.extract_strided_slice %0 {offsets = [3, 0], sizes = [1, 128], strides = [1, 1]} : vector<9x128xf32> to vector<1x128xf32>
    %cst_9 = arith.constant dense<0.000000e+00> : vector<8x128xf32>
    %15 = tpu.matmul %9, %11, %cst_9 {dimension_numbers = #tpu.dot_dimension_numbers<[1], [0], [0], [1], [0, 0, 1, 1], [], []>} : vector<8x128xf32>, vector<128x128xf32>, vector<8x128xf32> -> vector<8x128xf32>
    %16 = vector.broadcast %12 : vector<1x128xf32> to vector<8x128xf32>
    %17 = arith.addf %15, %16 : vector<8x128xf32>
    %cst_10 = arith.constant dense<0.000000e+00> : vector<8xf32>
    %18 = vector.multi_reduction <add>, %17, %cst_10 [1] : vector<8x128xf32> to vector<8xf32>
    %19 = vector.shape_cast %18 : vector<8xf32> to vector<8x1xf32>
    %cst_11 = arith.constant 3.125000e-02 : f32
    %20 = vector.broadcast %cst_11 : f32 to vector<8x1xf32>
    %21 = arith.mulf %19, %20 : vector<8x1xf32>
    %22 = vector.broadcast %21 : vector<8x1xf32> to vector<8x128xf32>
    %23 = arith.subf %17, %22 : vector<8x128xf32>
    %24 = vector.broadcast %1 : vector<1x128xf32> to vector<8x128xf32>
    %25 = arith.mulf %23, %24 : vector<8x128xf32>
    %26 = arith.mulf %25, %25 : vector<8x128xf32>
    %cst_12 = arith.constant dense<0.000000e+00> : vector<8xf32>
    %27 = vector.multi_reduction <add>, %26, %cst_12 [1] : vector<8x128xf32> to vector<8xf32>
    %28 = vector.shape_cast %27 : vector<8xf32> to vector<8x1xf32>
    %cst_13 = arith.constant 3.125000e-02 : f32
    %29 = vector.broadcast %cst_13 : f32 to vector<8x1xf32>
    %30 = arith.mulf %28, %29 : vector<8x1xf32>
    %cst_14 = arith.constant 9.99999974E-6 : f32
    %31 = vector.broadcast %cst_14 : f32 to vector<8x1xf32>
    %32 = arith.addf %30, %31 : vector<8x1xf32>
    %33 = math.rsqrt %32 : vector<8x1xf32>
    %34 = vector.broadcast %33 : vector<8x1xf32> to vector<8x128xf32>
    %35 = arith.mulf %25, %34 : vector<8x128xf32>
    %36 = vector.broadcast %13 : vector<1x128xf32> to vector<8x128xf32>
    %37 = arith.mulf %35, %36 : vector<8x128xf32>
    %38 = vector.broadcast %14 : vector<1x128xf32> to vector<8x128xf32>
    %39 = arith.addf %37, %38 : vector<8x128xf32>
    %cst_15 = arith.constant 0.000000e+00 : f32
    %40 = vector.broadcast %cst_15 : f32 to vector<8x128xf32>
    %41 = arith.maximumf %39, %40 : vector<8x128xf32>
    %c1 = arith.constant 1 : index
    %c0_16 = arith.constant 0 : index
    %c0_17 = arith.constant 0 : index
    %42 = vector.load %arg3[%c1, %c0_16, %c0_17] : memref<2x128x128xf32, #tpu.memory_space<vmem>>, vector<1x128x128xf32>
    %43 = vector.shape_cast %42 : vector<1x128x128xf32> to vector<128x128xf32>
    %44 = vector.extract_strided_slice %0 {offsets = [4, 0], sizes = [1, 128], strides = [1, 1]} : vector<9x128xf32> to vector<1x128xf32>
    %45 = vector.extract_strided_slice %0 {offsets = [5, 0], sizes = [1, 128], strides = [1, 1]} : vector<9x128xf32> to vector<1x128xf32>
    %46 = vector.extract_strided_slice %0 {offsets = [6, 0], sizes = [1, 128], strides = [1, 1]} : vector<9x128xf32> to vector<1x128xf32>
    %cst_18 = arith.constant dense<0.000000e+00> : vector<8x128xf32>
    %47 = tpu.matmul %41, %43, %cst_18 {dimension_numbers = #tpu.dot_dimension_numbers<[1], [0], [0], [1], [0, 0, 1, 1], [], []>} : vector<8x128xf32>, vector<128x128xf32>, vector<8x128xf32> -> vector<8x128xf32>
    %48 = vector.broadcast %44 : vector<1x128xf32> to vector<8x128xf32>
    %49 = arith.addf %47, %48 : vector<8x128xf32>
    %cst_19 = arith.constant dense<0.000000e+00> : vector<8xf32>
    %50 = vector.multi_reduction <add>, %49, %cst_19 [1] : vector<8x128xf32> to vector<8xf32>
    %51 = vector.shape_cast %50 : vector<8xf32> to vector<8x1xf32>
    %cst_20 = arith.constant 3.125000e-02 : f32
    %52 = vector.broadcast %cst_20 : f32 to vector<8x1xf32>
    %53 = arith.mulf %51, %52 : vector<8x1xf32>
    %54 = vector.broadcast %53 : vector<8x1xf32> to vector<8x128xf32>
    %55 = arith.subf %49, %54 : vector<8x128xf32>
    %56 = vector.broadcast %1 : vector<1x128xf32> to vector<8x128xf32>
    %57 = arith.mulf %55, %56 : vector<8x128xf32>
    %58 = arith.mulf %57, %57 : vector<8x128xf32>
    %cst_21 = arith.constant dense<0.000000e+00> : vector<8xf32>
    %59 = vector.multi_reduction <add>, %58, %cst_21 [1] : vector<8x128xf32> to vector<8xf32>
    %60 = vector.shape_cast %59 : vector<8xf32> to vector<8x1xf32>
    %cst_22 = arith.constant 3.125000e-02 : f32
    %61 = vector.broadcast %cst_22 : f32 to vector<8x1xf32>
    %62 = arith.mulf %60, %61 : vector<8x1xf32>
    %cst_23 = arith.constant 9.99999974E-6 : f32
    %63 = vector.broadcast %cst_23 : f32 to vector<8x1xf32>
    %64 = arith.addf %62, %63 : vector<8x1xf32>
    %65 = math.rsqrt %64 : vector<8x1xf32>
    %66 = vector.broadcast %65 : vector<8x1xf32> to vector<8x128xf32>
    %67 = arith.mulf %57, %66 : vector<8x128xf32>
    %68 = vector.broadcast %45 : vector<1x128xf32> to vector<8x128xf32>
    %69 = arith.mulf %67, %68 : vector<8x128xf32>
    %70 = vector.broadcast %46 : vector<1x128xf32> to vector<8x128xf32>
    %71 = arith.addf %69, %70 : vector<8x128xf32>
    %cst_24 = arith.constant 0.000000e+00 : f32
    %72 = vector.broadcast %cst_24 : f32 to vector<8x128xf32>
    %73 = arith.maximumf %71, %72 : vector<8x128xf32>
    %c0_25 = arith.constant 0 : index
    %c0_26 = arith.constant 0 : index
    %74 = vector.load %arg4[%c0_25, %c0_26] : memref<128x128xf32, #tpu.memory_space<vmem>>, vector<128x128xf32>
    %cst_27 = arith.constant dense<0.000000e+00> : vector<8x128xf32>
    %75 = tpu.matmul %73, %74, %cst_27 {dimension_numbers = #tpu.dot_dimension_numbers<[1], [0], [0], [1], [0, 0, 1, 1], [], []>} : vector<8x128xf32>, vector<128x128xf32>, vector<8x128xf32> -> vector<8x128xf32>
    %76 = vector.extract_strided_slice %0 {offsets = [7, 0], sizes = [1, 128], strides = [1, 1]} : vector<9x128xf32> to vector<1x128xf32>
    %77 = vector.broadcast %76 : vector<1x128xf32> to vector<8x128xf32>
    %78 = arith.addf %75, %77 : vector<8x128xf32>
    %c0_28 = arith.constant 0 : index
    %c0_29 = arith.constant 0 : index
    %79 = vector.load %arg6[%c0_28, %c0_29] : memref<8x128xf32, #tpu.memory_space<vmem>>, vector<8x128xf32>
    tpu.vector_store %arg6[%c0_28, %c0_29], %78 {strides = array<i32>} : memref<8x128xf32, #tpu.memory_space<vmem>>, vector<8x128xf32>,
    return
  }
  func.func @transform_0(%arg0: i32) -> (i32, i32) {
    %c0_i32 = arith.constant 0 : i32
    %c0_i32_0 = arith.constant 0 : i32
    return %arg0, %c0_i32 : i32, i32
  }
  func.func @transform_1(%arg0: i32) -> (i32, i32) {
    %c0_i32 = arith.constant 0 : i32
    %c0_i32_0 = arith.constant 0 : i32
    %c0_i32_1 = arith.constant 0 : i32
    return %c0_i32, %c0_i32_0 : i32, i32
  }
  func.func @transform_2(%arg0: i32) -> (i32, i32, i32) {
    %c0_i32 = arith.constant 0 : i32
    %c0_i32_0 = arith.constant 0 : i32
    %c0_i32_1 = arith.constant 0 : i32
    %c0_i32_2 = arith.constant 0 : i32
    return %c0_i32, %c0_i32_0, %c0_i32_1 : i32, i32, i32
  }
  func.func @transform_3(%arg0: i32) -> (i32, i32) {
    %c0_i32 = arith.constant 0 : i32
    %c0_i32_0 = arith.constant 0 : i32
    %c0_i32_1 = arith.constant 0 : i32
    return %c0_i32, %c0_i32_0 : i32, i32
  }
  func.func @transform_4(%arg0: i32) -> (i32, i32) {
    %c0_i32 = arith.constant 0 : i32
    %c0_i32_0 = arith.constant 0 : i32
    %c0_i32_1 = arith.constant 0 : i32
    return %c0_i32, %c0_i32_0 : i32, i32
  }
  func.func @transform_5(%arg0: i32) -> (i32, i32) {
    %c0_i32 = arith.constant 0 : i32
    %c0_i32_0 = arith.constant 0 : i32
    return %arg0, %c0_i32 : i32, i32
  }
}

module attributes {stable_mosaic.version = 11 : i64} {
  func.func @_mlp_kernel(%arg0: i32, %arg1: memref<8x128xf32, #tpu.memory_space<vmem>>, %arg2: memref<128x128xf32, #tpu.memory_space<vmem>>, %arg3: memref<2x128x128xf32, #tpu.memory_space<vmem>>, %arg4: memref<128x128xf32, #tpu.memory_space<vmem>>, %arg5: memref<9x128xf32, #tpu.memory_space<vmem>>, %arg6: memref<8x128xf32, #tpu.memory_space<vmem>>) attributes {dimension_semantics = [#tpu.dimension_semantics<parallel>], iteration_bounds = array<i64: 1>, scalar_prefetch = 0 : i64, scratch_operands = 0 : i64, tpu.core_type = #tpu.core_type<tc>, window_params = [{transform_indices = @transform_0, window_bounds = array<i64: 8, 128>}, {pipeline_mode = #tpu.pipeline_mode<synchronous>, transform_indices = @transform_1, window_bounds = array<i64: 128, 128>}, {pipeline_mode = #tpu.pipeline_mode<synchronous>, transform_indices = @transform_2, window_bounds = array<i64: 2, 128, 128>}, {pipeline_mode = #tpu.pipeline_mode<synchronous>, transform_indices = @transform_3, window_bounds = array<i64: 128, 128>}, {pipeline_mode = #tpu.pipeline_mode<synchronous>, transform_indices = @transform_4, window_bounds = array<i64: 9, 128>}, {transform_indices = @transform_5, window_bounds = array<i64: 8, 128>}]} {
    %c0 = arith.constant 0 : index
    %c0_0 = arith.constant 0 : index
    %0 = vector.load %arg5[%c0, %c0_0] : memref<9x128xf32, #tpu.memory_space<vmem>>, vector<9x128xf32>
    %1 = vector.extract_strided_slice %0 {offsets = [8, 0], sizes = [1, 128], strides = [1, 1]} : vector<9x128xf32> to vector<1x128xf32>
    %c0_1 = arith.constant 0 : index
    %c0_2 = arith.constant 0 : index
    %2 = vector.load %arg2[%c0_1, %c0_2] : memref<128x128xf32, #tpu.memory_space<vmem>>, vector<128x128xf32>
    %c0_3 = arith.constant 0 : index
    %c0_4 = arith.constant 0 : index
    %3 = vector.load %arg1[%c0_3, %c0_4] : memref<8x128xf32, #tpu.memory_space<vmem>>, vector<8x128xf32>
    %cst = arith.constant dense<0.000000e+00> : vector<8x128xf32>
    %4 = tpu.matmul %3, %2, %cst {dimension_numbers = #tpu.dot_dimension_numbers<[1], [0], [0], [1], [0, 0, 1, 1], [], []>} : vector<8x128xf32>, vector<128x128xf32>, vector<8x128xf32> -> vector<8x128xf32>
    %5 = vector.extract_strided_slice %0 {offsets = [0, 0], sizes = [1, 128], strides = [1, 1]} : vector<9x128xf32> to vector<1x128xf32>
    %6 = vector.broadcast %5 : vector<1x128xf32> to vector<8x128xf32>
    %7 = arith.addf %4, %6 : vector<8x128xf32>
    %cst_5 = arith.constant 0.000000e+00 : f32
    %8 = vector.broadcast %cst_5 : f32 to vector<8x128xf32>
    %9 = arith.maximumf %7, %8 : vector<8x128xf32>
    %c0_6 = arith.constant 0 : index
    %c0_7 = arith.constant 0 : index
    %c0_8 = arith.constant 0 : index
    %10 = vector.load %arg3[%c0_6, %c0_7, %c0_8] : memref<2x128x128xf32, #tpu.memory_space<vmem>>, vector<1x128x128xf32>
    %11 = vector.shape_cast %10 : vector<1x128x128xf32> to vector<128x128xf32>
    %12 = vector.extract_strided_slice %0 {offsets = [1, 0], sizes = [1, 128], strides = [1, 1]} : vector<9x128xf32> to vector<1x128xf32>
    %13 = vector.extract_strided_slice %0 {offsets = [2, 0], sizes = [1, 128], strides = [1, 1]} : vector<9x128xf32> to vector<1x128xf32>
    %14 = vector.extract_strided_slice %0 {offsets = [3, 0], sizes = [1, 128], strides = [1, 1]} : vector<9x128xf32> to vector<1x128xf32>
    %cst_9 = arith.constant dense<0.000000e+00> : vector<8x128xf32>
    %15 = tpu.matmul %9, %11, %cst_9 {dimension_numbers = #tpu.dot_dimension_numbers<[1], [0], [0], [1], [0, 0, 1, 1], [], []>} : vector<8x128xf32>, vector<128x128xf32>, vector<8x128xf32> -> vector<8x128xf32>
    %16 = vector.broadcast %12 : vector<1x128xf32> to vector<8x128xf32>
    %17 = arith.addf %15, %16 : vector<8x128xf32>
    %cst_10 = arith.constant dense<0.000000e+00> : vector<8xf32>
    %18 = vector.multi_reduction <add>, %17, %cst_10 [1] : vector<8x128xf32> to vector<8xf32>
    %19 = vector.shape_cast %18 : vector<8xf32> to vector<8x1xf32>
    %cst_11 = arith.constant 3.125000e-02 : f32
    %20 = vector.broadcast %cst_11 : f32 to vector<8x1xf32>
    %21 = arith.mulf %19, %20 : vector<8x1xf32>
    %22 = vector.broadcast %21 : vector<8x1xf32> to vector<8x128xf32>
    %23 = arith.subf %17, %22 : vector<8x128xf32>
    %24 = vector.broadcast %1 : vector<1x128xf32> to vector<8x128xf32>
    %25 = arith.mulf %23, %24 : vector<8x128xf32>
    %26 = arith.mulf %25, %25 : vector<8x128xf32>
    %cst_12 = arith.constant dense<0.000000e+00> : vector<8xf32>
    %27 = vector.multi_reduction <add>, %26, %cst_12 [1] : vector<8x128xf32> to vector<8xf32>
    %28 = vector.shape_cast %27 : vector<8xf32> to vector<8x1xf32>
    %cst_13 = arith.constant 3.125000e-02 : f32
    %29 = vector.broadcast %cst_13 : f32 to vector<8x1xf32>
    %30 = arith.mulf %28, %29 : vector<8x1xf32>
    %cst_14 = arith.constant 9.99999974E-6 : f32
    %31 = vector.broadcast %cst_14 : f32 to vector<8x1xf32>
    %32 = arith.addf %30, %31 : vector<8x1xf32>
    %33 = math.rsqrt %32 : vector<8x1xf32>
    %34 = vector.broadcast %33 : vector<8x1xf32> to vector<8x128xf32>
    %35 = arith.mulf %25, %34 : vector<8x128xf32>
    %36 = vector.broadcast %13 : vector<1x128xf32> to vector<8x128xf32>
    %37 = arith.mulf %35, %36 : vector<8x128xf32>
    %38 = vector.broadcast %14 : vector<1x128xf32> to vector<8x128xf32>
    %39 = arith.addf %37, %38 : vector<8x128xf32>
    %cst_15 = arith.constant 0.000000e+00 : f32
    %40 = vector.broadcast %cst_15 : f32 to vector<8x128xf32>
    %41 = arith.maximumf %39, %40 : vector<8x128xf32>
    %c1 = arith.constant 1 : index
    %c0_16 = arith.constant 0 : index
    %c0_17 = arith.constant 0 : index
    %42 = vector.load %arg3[%c1, %c0_16, %c0_17] : memref<2x128x128xf32, #tpu.memory_space<vmem>>, vector<1x128x128xf32>
    %43 = vector.shape_cast %42 : vector<1x128x128xf32> to vector<128x128xf32>
    %44 = vector.extract_strided_slice %0 {offsets = [4, 0], sizes = [1, 128], strides = [1, 1]} : vector<9x128xf32> to vector<1x128xf32>
    %45 = vector.extract_strided_slice %0 {offsets = [5, 0], sizes = [1, 128], strides = [1, 1]} : vector<9x128xf32> to vector<1x128xf32>
    %46 = vector.extract_strided_slice %0 {offsets = [6, 0], sizes = [1, 128], strides = [1, 1]} : vector<9x128xf32> to vector<1x128xf32>
    %cst_18 = arith.constant dense<0.000000e+00> : vector<8x128xf32>
    %47 = tpu.matmul %41, %43, %cst_18 {dimension_numbers = #tpu.dot_dimension_numbers<[1], [0], [0], [1], [0, 0, 1, 1], [], []>} : vector<8x128xf32>, vector<128x128xf32>, vector<8x128xf32> -> vector<8x128xf32>
    %48 = vector.broadcast %44 : vector<1x128xf32> to vector<8x128xf32>
    %49 = arith.addf %47, %48 : vector<8x128xf32>
    %cst_19 = arith.constant dense<0.000000e+00> : vector<8xf32>
    %50 = vector.multi_reduction <add>, %49, %cst_19 [1] : vector<8x128xf32> to vector<8xf32>
    %51 = vector.shape_cast %50 : vector<8xf32> to vector<8x1xf32>
    %cst_20 = arith.constant 3.125000e-02 : f32
    %52 = vector.broadcast %cst_20 : f32 to vector<8x1xf32>
    %53 = arith.mulf %51, %52 : vector<8x1xf32>
    %54 = vector.broadcast %53 : vector<8x1xf32> to vector<8x128xf32>
    %55 = arith.subf %49, %54 : vector<8x128xf32>
    %56 = vector.broadcast %1 : vector<1x128xf32> to vector<8x128xf32>
    %57 = arith.mulf %55, %56 : vector<8x128xf32>
    %58 = arith.mulf %57, %57 : vector<8x128xf32>
    %cst_21 = arith.constant dense<0.000000e+00> : vector<8xf32>
    %59 = vector.multi_reduction <add>, %58, %cst_21 [1] : vector<8x128xf32> to vector<8xf32>
    %60 = vector.shape_cast %59 : vector<8xf32> to vector<8x1xf32>
    %cst_22 = arith.constant 3.125000e-02 : f32
    %61 = vector.broadcast %cst_22 : f32 to vector<8x1xf32>
    %62 = arith.mulf %60, %61 : vector<8x1xf32>
    %cst_23 = arith.constant 9.99999974E-6 : f32
    %63 = vector.broadcast %cst_23 : f32 to vector<8x1xf32>
    %64 = arith.addf %62, %63 : vector<8x1xf32>
    %65 = math.rsqrt %64 : vector<8x1xf32>
    %66 = vector.broadcast %65 : vector<8x1xf32> to vector<8x128xf32>
    %67 = arith.mulf %57, %66 : vector<8x128xf32>
    %68 = vector.broadcast %45 : vector<1x128xf32> to vector<8x128xf32>
    %69 = arith.mulf %67, %68 : vector<8x128xf32>
    %70 = vector.broadcast %46 : vector<1x128xf32> to vector<8x128xf32>
    %71 = arith.addf %69, %70 : vector<8x128xf32>
    %cst_24 = arith.constant 0.000000e+00 : f32
    %72 = vector.broadcast %cst_24 : f32 to vector<8x128xf32>
    %73 = arith.maximumf %71, %72 : vector<8x128xf32>
    %c0_25 = arith.constant 0 : index
    %c0_26 = arith.constant 0 : index
    %74 = vector.load %arg4[%c0_25, %c0_26] : memref<128x128xf32, #tpu.memory_space<vmem>>, vector<128x128xf32>
    %cst_27 = arith.constant dense<0.000000e+00> : vector<8x128xf32>
    %75 = tpu.matmul %73, %74, %cst_27 {dimension_numbers = #tpu.dot_dimension_numbers<[1], [0], [0], [1], [0, 0, 1, 1], [], []>} : vector<8x128xf32>, vector<128x128xf32>, vector<8x128xf32> -> vector<8x128xf32>
    %76 = vector.extract_strided_slice %0 {offsets = [7, 0], sizes = [1, 128], strides = [1, 1]} : vector<9x128xf32> to vector<1x128xf32>
    %77 = vector.broadcast %76 : vector<1x128xf32> to vector<8x128xf32>
    %78 = arith.addf %75, %77 : vector<8x128xf32>
    %c0_28 = arith.constant 0 : index
    %c0_29 = arith.constant 0 : index
    %79 = vector.load %arg6[%c0_28, %c0_29] : memref<8x128xf32, #tpu.memory_space<vmem>>, vector<8x128xf32>
    tpu.vector_store %arg6[%c0_28, %c0_29], %78 {strides = array<i32>} : memref<8x128xf32, #tpu.memory_space<vmem>>, vector<8x128xf32>,
    return
  }
  func.func @transform_0(%arg0: i32) -> (i32, i32) {
    %c0_i32 = arith.constant 0 : i32
    %c0_i32_0 = arith.constant 0 : i32
    return %arg0, %c0_i32 : i32, i32
  }
  func.func @transform_1(%arg0: i32) -> (i32, i32) {
    %c0_i32 = arith.constant 0 : i32
    %c0_i32_0 = arith.constant 0 : i32
    %c0_i32_1 = arith.constant 0 : i32
    return %c0_i32, %c0_i32_0 : i32, i32
  }
  func.func @transform_2(%arg0: i32) -> (i32, i32, i32) {
    %c0_i32 = arith.constant 0 : i32
    %c0_i32_0 = arith.constant 0 : i32
    %c0_i32_1 = arith.constant 0 : i32
    %c0_i32_2 = arith.constant 0 : i32
    return %c0_i32, %c0_i32_0, %c0_i32_1 : i32, i32, i32
  }
  func.func @transform_3(%arg0: i32) -> (i32, i32) {
    %c0_i32 = arith.constant 0 : i32
    %c0_i32_0 = arith.constant 0 : i32
    %c0_i32_1 = arith.constant 0 : i32
    return %c0_i32, %c0_i32_0 : i32, i32
  }
  func.func @transform_4(%arg0: i32) -> (i32, i32) {
    %c0_i32 = arith.constant 0 : i32
    %c0_i32_0 = arith.constant 0 : i32
    %c0_i32_1 = arith.constant 0 : i32
    return %c0_i32, %c0_i32_0 : i32, i32
  }
  func.func @transform_5(%arg0: i32) -> (i32, i32) {
    %c0_i32 = arith.constant 0 : i32
    %c0_i32_0 = arith.constant 0 : i32
    return %arg0, %c0_i32 : i32, i32
  }
}

</mosaic_0001>

<llo_original>
// kernel: tpu_custom_call.1
$region0: #{tpu_custom_call.1}
  #allocation0 [shape = 'u32[]', space=smem, size = 0x4, offset = 0x4, fixed_abs, tag = 'smem constant byte address 0x4 - core index']
  #allocation1 [shape = 'u32[144,128]{1,0:T(1,128)}', space=vmem, size = 0x12000, scoped, tag = 'internal scratch']
  %s0 = inlined_call_operand.hbm [shape: f32[8,128], index: 0, kind: input, shape index: {}]
  %s1 = inlined_call_operand.hbm [shape: f32[128,128], index: 1, kind: input, shape index: {}]
  %s2 = inlined_call_operand.hbm [shape: f32[2,128,128], index: 2, kind: input, shape index: {}]
  %s3 = inlined_call_operand.hbm [shape: f32[128,128], index: 3, kind: input, shape index: {}]
  %s4 = inlined_call_operand.hbm [shape: f32[9,128], index: 4, kind: input, shape index: {}]
  %s5 = inlined_call_operand.hbm [shape: f32[8,128], index: 5, kind: output, shape index: {}]
  %s6 = sld [smem:[#allocation0]]
  $region50: #{tpu_custom_call.1} parent=0
    _
  %s8 = ssub.s32 1, %s6
  %s9 = scalar_select 0, %s8, %s6
  $region1: #{tpu_custom_call.1} parent=0
    #allocation2 [shape = 'u8[4096]{0}', space=vmem, size = 0x1000, scoped, tag = 'input window, operand 0, single buffered']
    #allocation3 [shape = 's32[1]{0}', space=sflag, size = 0x4, scoped, tag = 'scoped memory for tpu_custom_call.1']
    #allocation4 [shape = 's32[1]{0}', space=sflag, size = 0x4, scoped, tag = 'scoped memory for tpu_custom_call.1']
    #allocation5 [shape = 'u8[65536]{0}', space=vmem, size = 0x10000, scoped, tag = 'input window, operand 1, single buffered']
    #allocation6 [shape = 's32[1]{0}', space=sflag, size = 0x4, scoped, tag = 'scoped memory for tpu_custom_call.1']
    #allocation7 [shape = 'u8[131072]{0}', space=vmem, size = 0x20000, scoped, tag = 'input window, operand 2, single buffered']
    #allocation8 [shape = 'u8[65536]{0}', space=vmem, size = 0x10000, scoped, tag = 'input window, operand 3, single buffered']
    #allocation9 [shape = 's32[1]{0}', space=sflag, size = 0x4, scoped, tag = 'scoped memory for tpu_custom_call.1']
    #allocation10 [shape = 'u8[8192]{0}', space=vmem, size = 0x2000, scoped, tag = 'input window, operand 4, single buffered']
    #allocation11 [shape = 'u8[4096]{0}', space=vmem, size = 0x1000, scoped, tag = 'output window, operand 0, single buffered']
    %10 = vsyncpa [#allocation3], 0
    %11 = vsyncpa [#allocation6], 0
    %12 = vsyncpa [#allocation9], 0
    %13 = vsyncpa [#allocation4], 0
    // Predicated region
    $region2: #{tpu_custom_call.1} parent=1 // pred_check
      _
    $region3: #{tpu_custom_call.1} parent=1 // pred_check_branch
      %15 = sbr.rel (0) target = $region5
    $region4: #{tpu_custom_call.1} parent=1 // pred_region
      %s17 = ssub.s32 128, 128
      %18 = vsyncadd [#allocation3], %s17
      %s20 = sshll.u32 [#allocation2], 4
      %s21 = int_to_ptr.vmem [resolvable:$true] %s20
      %23 = dma.hbm_to_vmem [thread:$0]  %s0, 128, %s21, [#allocation3]
    $region5: #{tpu_custom_call.1} parent=1 // pred_fallthru
      _
    // Predicated region
    $region6: #{tpu_custom_call.1} parent=1 // pred_check
      _
    $region7: #{tpu_custom_call.1} parent=1 // pred_check_branch
      %25 = sbr.rel (0) target = $region9
    $region8: #{tpu_custom_call.1} parent=1 // pred_region
      %s27 = ssub.s32 2048, 2048
      %28 = vsyncadd [#allocation6], %s27
      %s29 = sshll.u32 [#allocation5], 4
      %s30 = int_to_ptr.vmem [resolvable:$true] %s29
      %35 = dma.hbm_to_vmem [thread:$0]  %s1, 2048, %s30, [#allocation6], 128, 128, 8
    $region9: #{tpu_custom_call.1} parent=1 // pred_fallthru
      _
    // Predicated region
    $region10: #{tpu_custom_call.1} parent=1 // pred_check
      _
    $region11: #{tpu_custom_call.1} parent=1 // pred_check_branch
      %37 = sbr.rel (0) target = $region13
    $region12: #{tpu_custom_call.1} parent=1 // pred_region
      %s39 = ssub.s32 4096, 4096
      %40 = vsyncadd [#allocation6], %s39
      %s41 = sshll.u32 [#allocation7], 4
      %s42 = int_to_ptr.vmem [resolvable:$true] %s41
      %47 = dma.hbm_to_vmem [thread:$0]  %s2, 4096, %s42, [#allocation6], 128, 128, 8
    $region13: #{tpu_custom_call.1} parent=1 // pred_fallthru
      _
    // Predicated region
    $region14: #{tpu_custom_call.1} parent=1 // pred_check
      _
    $region15: #{tpu_custom_call.1} parent=1 // pred_check_branch
      %49 = sbr.rel (0) target = $region17
    $region16: #{tpu_custom_call.1} parent=1 // pred_region
      %s51 = ssub.s32 2048, 2048
      %52 = vsyncadd [#allocation9], %s51
      %s53 = sshll.u32 [#allocation8], 4
      %s54 = int_to_ptr.vmem [resolvable:$true] %s53
      %59 = dma.hbm_to_vmem [thread:$0]  %s3, 2048, %s54, [#allocation9], 128, 128, 8
    $region17: #{tpu_custom_call.1} parent=1 // pred_fallthru
      _
    // Predicated region
    $region18: #{tpu_custom_call.1} parent=1 // pred_check
      _
    $region19: #{tpu_custom_call.1} parent=1 // pred_check_branch
      %61 = sbr.rel (0) target = $region21
    $region20: #{tpu_custom_call.1} parent=1 // pred_region
      %s63 = ssub.s32 256, 256
      %64 = vsyncadd [#allocation9], %s63
      %s65 = sshll.u32 [#allocation10], 4
      %s66 = int_to_ptr.vmem [resolvable:$true] %s65
      %71 = dma.hbm_to_vmem [thread:$0]  %s4, 256, %s66, [#allocation9], 128, 128, 8
    $region21: #{tpu_custom_call.1} parent=1 // pred_fallthru
      _
    // Predicated region
    $region22: #{tpu_custom_call.1} parent=1 // pred_check
      _
    $region23: #{tpu_custom_call.1} parent=1 // pred_check_branch
      %73 = sbr.rel (0) target = $region25
    $region24: #{tpu_custom_call.1} parent=1 // pred_region
      %74 = dma.done [#allocation3], 128
    $region25: #{tpu_custom_call.1} parent=1 // pred_fallthru
      _
    // Predicated region
    $region26: #{tpu_custom_call.1} parent=1 // pred_check
      _
    $region27: #{tpu_custom_call.1} parent=1 // pred_check_branch
      %76 = sbr.rel (0) target = $region29
    $region28: #{tpu_custom_call.1} parent=1 // pred_region
      %77 = dma.done [#allocation6], 2048
    $region29: #{tpu_custom_call.1} parent=1 // pred_fallthru
      _
    // Predicated region
    $region30: #{tpu_custom_call.1} parent=1 // pred_check
      _
    $region31: #{tpu_custom_call.1} parent=1 // pred_check_branch
      %79 = sbr.rel (0) target = $region33
    $region32: #{tpu_custom_call.1} parent=1 // pred_region
      %80 = dma.done [#allocation6], 4096
    $region33: #{tpu_custom_call.1} parent=1 // pred_fallthru
      _
    // Predicated region
    $region34: #{tpu_custom_call.1} parent=1 // pred_check
      _
    $region35: #{tpu_custom_call.1} parent=1 // pred_check_branch
      %82 = sbr.rel (0) target = $region37
    $region36: #{tpu_custom_call.1} parent=1 // pred_region
      %83 = dma.done [#allocation9], 2048
    $region37: #{tpu_custom_call.1} parent=1 // pred_fallthru
      _
    // Predicated region
    $region38: #{tpu_custom_call.1} parent=1 // pred_check
      _
    $region39: #{tpu_custom_call.1} parent=1 // pred_check_branch
      %85 = sbr.rel (0) target = $region41
    $region40: #{tpu_custom_call.1} parent=1 // pred_region
      %86 = dma.done [#allocation9], 256
    $region41: #{tpu_custom_call.1} parent=1 // pred_fallthru
      _
    %v87 = vld [vmem:[#allocation10] sm:$0xff]
    %v88 = vld [vmem:[#allocation10 + $0x8] sm:$0x1]
    %v89 = vld [vmem:[#allocation5] sm:$0xff]
    %v90 = vld [vmem:[#allocation5 + $0x8] sm:$0xff]
    %v91 = vld [vmem:[#allocation5 + $0x10] sm:$0xff]
    %v92 = vld [vmem:[#allocation5 + $0x18] sm:$0xff]
    %v93 = vld [vmem:[#allocation5 + $0x20] sm:$0xff]
    %v94 = vld [vmem:[#allocation5 + $0x28] sm:$0xff]
    %v95 = vld [vmem:[#allocation5 + $0x30] sm:$0xff]
    %v96 = vld [vmem:[#allocation5 + $0x38] sm:$0xff]
    %v97 = vld [vmem:[#allocation5 + $0x40] sm:$0xff]
    %v98 = vld [vmem:[#allocation5 + $0x48] sm:$0xff]
    %v99 = vld [vmem:[#allocation5 + $0x50] sm:$0xff]
    %v100 = vld [vmem:[#allocation5 + $0x58] sm:$0xff]
    %v101 = vld [vmem:[#allocation5 + $0x60] sm:$0xff]
    %v102 = vld [vmem:[#allocation5 + $0x68] sm:$0xff]
    %v103 = vld [vmem:[#allocation5 + $0x70] sm:$0xff]
    %v104 = vld [vmem:[#allocation5 + $0x78] sm:$0xff]
    %v105 = vld [vmem:[#allocation2] sm:$0xff]
    %v106 = vlaneseq
    %v107 = vshrl.u32 %v106, 7
    %v108 = vsub.s32 0, %v107
    %v109 = vrot.slane %v87, %v108
    %110 = vmatprep.subr.mxu0 0.0
    %111 = vmatpush1.msra.mxu0 %v104
    %112 = vmatprep.subr.mxu0 0.0
    %113 = vmatpush1.msra.mxu0 %v103
    %114 = vmatprep.subr.mxu0 0.0
    %115 = vmatpush1.msra.mxu0 %v102
    %116 = vmatprep.subr.mxu0 0.0
    %117 = vmatpush1.msra.mxu0 %v101
    %118 = vmatprep.subr.mxu0 0.0
    %119 = vmatpush1.msra.mxu0 %v100
    %120 = vmatprep.subr.mxu0 0.0
    %121 = vmatpush1.msra.mxu0 %v99
    %122 = vmatprep.subr.mxu0 0.0
    %123 = vmatpush1.msra.mxu0 %v98
    %124 = vmatprep.subr.mxu0 0.0
    %125 = vmatpush1.msra.mxu0 %v97
    %126 = vmatprep.subr.mxu0 0.0
    %127 = vmatpush1.msra.mxu0 %v96
    %128 = vmatprep.subr.mxu0 0.0
    %129 = vmatpush1.msra.mxu0 %v95
    %130 = vmatprep.subr.mxu0 0.0
    %131 = vmatpush1.msra.mxu0 %v94
    %132 = vmatprep.subr.mxu0 0.0
    %133 = vmatpush1.msra.mxu0 %v93
    %134 = vmatprep.subr.mxu0 0.0
    %135 = vmatpush1.msra.mxu0 %v92
    %136 = vmatprep.subr.mxu0 0.0
    %137 = vmatpush1.msra.mxu0 %v91
    %138 = vmatprep.subr.mxu0 0.0
    %139 = vmatpush1.msra.mxu0 %v90
    %140 = vmatprep.subr.mxu0 0.0
    %141 = vmatpush1.msra.mxu0 %v89
    %142 = vmatprep.subr.mxu0 0.0
    %143 = vmatpush2.msra.mxu0 0.0
    %144 = vmatprep.subr.mxu0 0.0
    %145 = vmatpush2.msra.mxu0 0.0
    %146 = vmatprep.subr.mxu0 0.0
    %147 = vmatpush2.msra.mxu0 0.0
    %148 = vmatprep.subr.mxu0 0.0
    %149 = vmatpush2.msra.mxu0 0.0
    %150 = vmatprep.subr.mxu0 0.0
    %151 = vmatpush2.msra.mxu0 0.0
    %152 = vmatprep.subr.mxu0 0.0
    %153 = vmatpush2.msra.mxu0 0.0
    %154 = vmatprep.subr.mxu0 0.0
    %155 = vmatpush2.msra.mxu0 0.0
    %156 = vmatprep.subr.mxu0 0.0
    %157 = vmatpush2.msra.mxu0 0.0
    %158 = vmatprep.subr.mxu0 0.0
    %159 = vmatpush2.msra.mxu0 0.0
    %160 = vmatprep.subr.mxu0 0.0
    %161 = vmatpush2.msra.mxu0 0.0
    %162 = vmatprep.subr.mxu0 0.0
    %163 = vmatpush2.msra.mxu0 0.0
    %164 = vmatprep.subr.mxu0 0.0
    %165 = vmatpush2.msra.mxu0 0.0
    %166 = vmatprep.subr.mxu0 0.0
    %167 = vmatpush2.msra.mxu0 0.0
    %168 = vmatprep.subr.mxu0 0.0
    %169 = vmatpush2.msra.mxu0 0.0
    %170 = vmatprep.subr.mxu0 0.0
    %171 = vmatpush2.msra.mxu0 0.0
    %172 = vmatprep.subr.mxu0 0.0
    %173 = vmatpush2.msra.mxu0 0.0
    %174 = vmatprep.mubr.f32.mxu0 0.0
    %175 = vmatmul.mubr.f32.gmra.mxu0 %v105
    %v176 = vpop.f32.mrf.mxu0
    %v177 = vadd.f32 %v109, %v176
    %v178 = vpop.f32.mrf.mxu0
    %179 = vdwg.mxu0
    %v180 = vmax.f32 %v177, 0.0
    %v181 = vld [vmem:[#allocation7] sm:$0xff]
    %v182 = vld [vmem:[#allocation7 + $0x8] sm:$0xff]
    %v183 = vld [vmem:[#allocation7 + $0x10] sm:$0xff]
    %v184 = vld [vmem:[#allocation7 + $0x18] sm:$0xff]
    %v185 = vld [vmem:[#allocation7 + $0x20] sm:$0xff]
    %v186 = vld [vmem:[#allocation7 + $0x28] sm:$0xff]
    %v187 = vld [vmem:[#allocation7 + $0x30] sm:$0xff]
    %v188 = vld [vmem:[#allocation7 + $0x38] sm:$0xff]
    %v189 = vld [vmem:[#allocation7 + $0x40] sm:$0xff]
    %v190 = vld [vmem:[#allocation7 + $0x48] sm:$0xff]
    %v191 = vld [vmem:[#allocation7 + $0x50] sm:$0xff]
    %v192 = vld [vmem:[#allocation7 + $0x58] sm:$0xff]
    %v193 = vld [vmem:[#allocation7 + $0x60] sm:$0xff]
    %v194 = vld [vmem:[#allocation7 + $0x68] sm:$0xff]
    %v195 = vld [vmem:[#allocation7 + $0x70] sm:$0xff]
    %v196 = vld [vmem:[#allocation7 + $0x78] sm:$0xff]
    %v197 = vlaneseq
    %v198 = vshrl.u32 %v197, 7
    %v199 = vsub.s32 1, %v198
    %v200 = vrot.slane %v87, %v199
    %201 = vmatprep.subr.mxu0 0.0
    %202 = vmatpush1.msra.mxu0 %v196
    %203 = vmatprep.subr.mxu0 0.0
    %204 = vmatpush1.msra.mxu0 %v195
    %205 = vmatprep.subr.mxu0 0.0
    %206 = vmatpush1.msra.mxu0 %v194
    %207 = vmatprep.subr.mxu0 0.0
    %208 = vmatpush1.msra.mxu0 %v193
    %209 = vmatprep.subr.mxu0 0.0
    %210 = vmatpush1.msra.mxu0 %v192
    %211 = vmatprep.subr.mxu0 0.0
    %212 = vmatpush1.msra.mxu0 %v191
    %213 = vmatprep.subr.mxu0 0.0
    %214 = vmatpush1.msra.mxu0 %v190
    %215 = vmatprep.subr.mxu0 0.0
    %216 = vmatpush1.msra.mxu0 %v189
    %217 = vmatprep.subr.mxu0 0.0
    %218 = vmatpush1.msra.mxu0 %v188
    %219 = vmatprep.subr.mxu0 0.0
    %220 = vmatpush1.msra.mxu0 %v187
    %221 = vmatprep.subr.mxu0 0.0
    %222 = vmatpush1.msra.mxu0 %v186
    %223 = vmatprep.subr.mxu0 0.0
    %224 = vmatpush1.msra.mxu0 %v185
    %225 = vmatprep.subr.mxu0 0.0
    %226 = vmatpush1.msra.mxu0 %v184
    %227 = vmatprep.subr.mxu0 0.0
    %228 = vmatpush1.msra.mxu0 %v183
    %229 = vmatprep.subr.mxu0 0.0
    %230 = vmatpush1.msra.mxu0 %v182
    %231 = vmatprep.subr.mxu0 0.0
    %232 = vmatpush1.msra.mxu0 %v181
    %233 = vmatprep.subr.mxu0 0.0
    %234 = vmatpush2.msra.mxu0 0.0
    %235 = vmatprep.subr.mxu0 0.0
    %236 = vmatpush2.msra.mxu0 0.0
    %237 = vmatprep.subr.mxu0 0.0
    %238 = vmatpush2.msra.mxu0 0.0
    %239 = vmatprep.subr.mxu0 0.0
    %240 = vmatpush2.msra.mxu0 0.0
    %241 = vmatprep.subr.mxu0 0.0
    %242 = vmatpush2.msra.mxu0 0.0
    %243 = vmatprep.subr.mxu0 0.0
    %244 = vmatpush2.msra.mxu0 0.0
    %245 = vmatprep.subr.mxu0 0.0
    %246 = vmatpush2.msra.mxu0 0.0
    %247 = vmatprep.subr.mxu0 0.0
    %248 = vmatpush2.msra.mxu0 0.0
    %249 = vmatprep.subr.mxu0 0.0
    %250 = vmatpush2.msra.mxu0 0.0
    %251 = vmatprep.subr.mxu0 0.0
    %252 = vmatpush2.msra.mxu0 0.0
    %253 = vmatprep.subr.mxu0 0.0
    %254 = vmatpush2.msra.mxu0 0.0
    %255 = vmatprep.subr.mxu0 0.0
    %256 = vmatpush2.msra.mxu0 0.0
    %257 = vmatprep.subr.mxu0 0.0
    %258 = vmatpush2.msra.mxu0 0.0
    %259 = vmatprep.subr.mxu0 0.0
    %260 = vmatpush2.msra.mxu0 0.0
    %261 = vmatprep.subr.mxu0 0.0
    %262 = vmatpush2.msra.mxu0 0.0
    %263 = vmatprep.subr.mxu0 0.0
    %264 = vmatpush2.msra.mxu0 0.0
    %265 = vmatprep.mubr.f32.mxu0 0.0
    %266 = vmatmul.mubr.f32.gmra.mxu0 %v180
    %v267 = vpop.f32.mrf.mxu0
    %v268 = vadd.f32 %v200, %v267
    %v269 = vpop.f32.mrf.mxu0
    %270 = vdwg.mxu0
    %271 = vadd.xlane.f32.xlu0 %v268
    %v272 = vpop.xlane.xlu0 %271
    %v273 = vmul.f32 %v272, 0.03125
    %v274 = vsub.f32 %v268, %v273
    %v275 = vlaneseq
    %v276 = vshrl.u32 %v275, 7
    %v277 = vsub.s32 0, %v276
    %v278 = vrot.slane %v88, %v277
    %v279 = vmul.f32 %v274, %v278
    %v280 = vmul.f32 %v279, %v279
    %281 = vadd.xlane.f32.xlu0 %v280
    %v282 = vpop.xlane.xlu0 %281
    %v283 = vmul.f32 %v282, 0.03125
    %v284 = vadd.f32 %v283, 1e-05
    %v285 = vrsqrt.pop %v284
    %v286 = vmul.f32 %v279, %v285
    %v287 = vlaneseq
    %v288 = vshrl.u32 %v287, 7
    %v289 = vsub.s32 2, %v288
    %v290 = vrot.slane %v87, %v289
    %v291 = vmul.f32 %v286, %v290
    %v292 = vlaneseq
    %v293 = vshrl.u32 %v292, 7
    %v294 = vsub.s32 3, %v293
    %v295 = vrot.slane %v87, %v294
    %v296 = vadd.f32 %v291, %v295
    %v297 = vmax.f32 %v296, 0.0
    %s298 = scalar_lea.vmem [#allocation7], 128
    %v299 = vld [vmem:[%s298] sm:$0xff]
    %v300 = vld [vmem:[%s298 + $0x8] sm:$0xff]
    %v301 = vld [vmem:[%s298 + $0x10] sm:$0xff]
    %v302 = vld [vmem:[%s298 + $0x18] sm:$0xff]
    %v303 = vld [vmem:[%s298 + $0x20] sm:$0xff]
    %v304 = vld [vmem:[%s298 + $0x28] sm:$0xff]
    %v305 = vld [vmem:[%s298 + $0x30] sm:$0xff]
    %v306 = vld [vmem:[%s298 + $0x38] sm:$0xff]
    %v307 = vld [vmem:[%s298 + $0x40] sm:$0xff]
    %v308 = vld [vmem:[%s298 + $0x48] sm:$0xff]
    %v309 = vld [vmem:[%s298 + $0x50] sm:$0xff]
    %v310 = vld [vmem:[%s298 + $0x58] sm:$0xff]
    %v311 = vld [vmem:[%s298 + $0x60] sm:$0xff]
    %v312 = vld [vmem:[%s298 + $0x68] sm:$0xff]
    %v313 = vld [vmem:[%s298 + $0x70] sm:$0xff]
    %v314 = vld [vmem:[%s298 + $0x78] sm:$0xff]
    %v315 = vlaneseq
    %v316 = vshrl.u32 %v315, 7
    %v317 = vsub.s32 4, %v316
    %v318 = vrot.slane %v87, %v317
    %319 = vmatprep.subr.mxu0 0.0
    %320 = vmatpush1.msra.mxu0 %v314
    %321 = vmatprep.subr.mxu0 0.0
    %322 = vmatpush1.msra.mxu0 %v313
    %323 = vmatprep.subr.mxu0 0.0
    %324 = vmatpush1.msra.mxu0 %v312
    %325 = vmatprep.subr.mxu0 0.0
    %326 = vmatpush1.msra.mxu0 %v311
    %327 = vmatprep.subr.mxu0 0.0
    %328 = vmatpush1.msra.mxu0 %v310
    %329 = vmatprep.subr.mxu0 0.0
    %330 = vmatpush1.msra.mxu0 %v309
    %331 = vmatprep.subr.mxu0 0.0
    %332 = vmatpush1.msra.mxu0 %v308
    %333 = vmatprep.subr.mxu0 0.0
    %334 = vmatpush1.msra.mxu0 %v307
    %335 = vmatprep.subr.mxu0 0.0
    %336 = vmatpush1.msra.mxu0 %v306
    %337 = vmatprep.subr.mxu0 0.0
    %338 = vmatpush1.msra.mxu0 %v305
    %339 = vmatprep.subr.mxu0 0.0
    %340 = vmatpush1.msra.mxu0 %v304
    %341 = vmatprep.subr.mxu0 0.0
    %342 = vmatpush1.msra.mxu0 %v303
    %343 = vmatprep.subr.mxu0 0.0
    %344 = vmatpush1.msra.mxu0 %v302
    %345 = vmatprep.subr.mxu0 0.0
    %346 = vmatpush1.msra.mxu0 %v301
    %347 = vmatprep.subr.mxu0 0.0
    %348 = vmatpush1.msra.mxu0 %v300
    %349 = vmatprep.subr.mxu0 0.0
    %350 = vmatpush1.msra.mxu0 %v299
    %351 = vmatprep.subr.mxu0 0.0
    %352 = vmatpush2.msra.mxu0 0.0
    %353 = vmatprep.subr.mxu0 0.0
    %354 = vmatpush2.msra.mxu0 0.0
    %355 = vmatprep.subr.mxu0 0.0
    %356 = vmatpush2.msra.mxu0 0.0
    %357 = vmatprep.subr.mxu0 0.0
    %358 = vmatpush2.msra.mxu0 0.0
    %359 = vmatprep.subr.mxu0 0.0
    %360 = vmatpush2.msra.mxu0 0.0
    %361 = vmatprep.subr.mxu0 0.0
    %362 = vmatpush2.msra.mxu0 0.0
    %363 = vmatprep.subr.mxu0 0.0
    %364 = vmatpush2.msra.mxu0 0.0
    %365 = vmatprep.subr.mxu0 0.0
    %366 = vmatpush2.msra.mxu0 0.0
    %367 = vmatprep.subr.mxu0 0.0
    %368 = vmatpush2.msra.mxu0 0.0
    %369 = vmatprep.subr.mxu0 0.0
    %370 = vmatpush2.msra.mxu0 0.0
    %371 = vmatprep.subr.mxu0 0.0
    %372 = vmatpush2.msra.mxu0 0.0
    %373 = vmatprep.subr.mxu0 0.0
    %374 = vmatpush2.msra.mxu0 0.0
    %375 = vmatprep.subr.mxu0 0.0
    %376 = vmatpush2.msra.mxu0 0.0
    %377 = vmatprep.subr.mxu0 0.0
    %378 = vmatpush2.msra.mxu0 0.0
    %379 = vmatprep.subr.mxu0 0.0
    %380 = vmatpush2.msra.mxu0 0.0
    %381 = vmatprep.subr.mxu0 0.0
    %382 = vmatpush2.msra.mxu0 0.0
    %383 = vmatprep.mubr.f32.mxu0 0.0
    %384 = vmatmul.mubr.f32.gmra.mxu0 %v297
    %v385 = vpop.f32.mrf.mxu0
    %v386 = vadd.f32 %v318, %v385
    %v387 = vpop.f32.mrf.mxu0
    %388 = vdwg.mxu0
    %389 = vadd.xlane.f32.xlu0 %v386
    %v390 = vpop.xlane.xlu0 %389
    %v391 = vmul.f32 %v390, 0.03125
    %v392 = vsub.f32 %v386, %v391
    %v393 = vmul.f32 %v392, %v278
    %v394 = vmul.f32 %v393, %v393
    %395 = vadd.xlane.f32.xlu0 %v394
    %v396 = vpop.xlane.xlu0 %395
    %v397 = vmul.f32 %v396, 0.03125
    %v398 = vadd.f32 %v397, 1e-05
    %v399 = vrsqrt.pop %v398
    %v400 = vmul.f32 %v393, %v399
    %v401 = vlaneseq
    %v402 = vshrl.u32 %v401, 7
    %v403 = vsub.s32 5, %v402
    %v404 = vrot.slane %v87, %v403
    %v405 = vmul.f32 %v400, %v404
    %v406 = vlaneseq
    %v407 = vshrl.u32 %v406, 7
    %v408 = vsub.s32 6, %v407
    %v409 = vrot.slane %v87, %v408
    %v410 = vadd.f32 %v405, %v409
    %v411 = vmax.f32 %v410, 0.0
    %v412 = vld [vmem:[#allocation8] sm:$0xff]
    %v413 = vld [vmem:[#allocation8 + $0x8] sm:$0xff]
    %v414 = vld [vmem:[#allocation8 + $0x10] sm:$0xff]
    %v415 = vld [vmem:[#allocation8 + $0x18] sm:$0xff]
    %v416 = vld [vmem:[#allocation8 + $0x20] sm:$0xff]
    %v417 = vld [vmem:[#allocation8 + $0x28] sm:$0xff]
    %v418 = vld [vmem:[#allocation8 + $0x30] sm:$0xff]
    %v419 = vld [vmem:[#allocation8 + $0x38] sm:$0xff]
    %v420 = vld [vmem:[#allocation8 + $0x40] sm:$0xff]
    %v421 = vld [vmem:[#allocation8 + $0x48] sm:$0xff]
    %v422 = vld [vmem:[#allocation8 + $0x50] sm:$0xff]
    %v423 = vld [vmem:[#allocation8 + $0x58] sm:$0xff]
    %v424 = vld [vmem:[#allocation8 + $0x60] sm:$0xff]
    %v425 = vld [vmem:[#allocation8 + $0x68] sm:$0xff]
    %v426 = vld [vmem:[#allocation8 + $0x70] sm:$0xff]
    %v427 = vld [vmem:[#allocation8 + $0x78] sm:$0xff]
    %v428 = vlaneseq
    %v429 = vshrl.u32 %v428, 7
    %v430 = vsub.s32 7, %v429
    %v431 = vrot.slane %v87, %v430
    %432 = vmatprep.subr.mxu0 0.0
    %433 = vmatpush1.msra.mxu0 %v427
    %434 = vmatprep.subr.mxu0 0.0
    %435 = vmatpush1.msra.mxu0 %v426
    %436 = vmatprep.subr.mxu0 0.0
    %437 = vmatpush1.msra.mxu0 %v425
    %438 = vmatprep.subr.mxu0 0.0
    %439 = vmatpush1.msra.mxu0 %v424
    %440 = vmatprep.subr.mxu0 0.0
    %441 = vmatpush1.msra.mxu0 %v423
    %442 = vmatprep.subr.mxu0 0.0
    %443 = vmatpush1.msra.mxu0 %v422
    %444 = vmatprep.subr.mxu0 0.0
    %445 = vmatpush1.msra.mxu0 %v421
    %446 = vmatprep.subr.mxu0 0.0
    %447 = vmatpush1.msra.mxu0 %v420
    %448 = vmatprep.subr.mxu0 0.0
    %449 = vmatpush1.msra.mxu0 %v419
    %450 = vmatprep.subr.mxu0 0.0
    %451 = vmatpush1.msra.mxu0 %v418
    %452 = vmatprep.subr.mxu0 0.0
    %453 = vmatpush1.msra.mxu0 %v417
    %454 = vmatprep.subr.mxu0 0.0
    %455 = vmatpush1.msra.mxu0 %v416
    %456 = vmatprep.subr.mxu0 0.0
    %457 = vmatpush1.msra.mxu0 %v415
    %458 = vmatprep.subr.mxu0 0.0
    %459 = vmatpush1.msra.mxu0 %v414
    %460 = vmatprep.subr.mxu0 0.0
    %461 = vmatpush1.msra.mxu0 %v413
    %462 = vmatprep.subr.mxu0 0.0
    %463 = vmatpush1.msra.mxu0 %v412
    %464 = vmatprep.subr.mxu0 0.0
    %465 = vmatpush2.msra.mxu0 0.0
    %466 = vmatprep.subr.mxu0 0.0
    %467 = vmatpush2.msra.mxu0 0.0
    %468 = vmatprep.subr.mxu0 0.0
    %469 = vmatpush2.msra.mxu0 0.0
    %470 = vmatprep.subr.mxu0 0.0
    %471 = vmatpush2.msra.mxu0 0.0
    %472 = vmatprep.subr.mxu0 0.0
    %473 = vmatpush2.msra.mxu0 0.0
    %474 = vmatprep.subr.mxu0 0.0
    %475 = vmatpush2.msra.mxu0 0.0
    %476 = vmatprep.subr.mxu0 0.0
    %477 = vmatpush2.msra.mxu0 0.0
    %478 = vmatprep.subr.mxu0 0.0
    %479 = vmatpush2.msra.mxu0 0.0
    %480 = vmatprep.subr.mxu0 0.0
    %481 = vmatpush2.msra.mxu0 0.0
    %482 = vmatprep.subr.mxu0 0.0
    %483 = vmatpush2.msra.mxu0 0.0
    %484 = vmatprep.subr.mxu0 0.0
    %485 = vmatpush2.msra.mxu0 0.0
    %486 = vmatprep.subr.mxu0 0.0
    %487 = vmatpush2.msra.mxu0 0.0
    %488 = vmatprep.subr.mxu0 0.0
    %489 = vmatpush2.msra.mxu0 0.0
    %490 = vmatprep.subr.mxu0 0.0
    %491 = vmatpush2.msra.mxu0 0.0
    %492 = vmatprep.subr.mxu0 0.0
    %493 = vmatpush2.msra.mxu0 0.0
    %494 = vmatprep.subr.mxu0 0.0
    %495 = vmatpush2.msra.mxu0 0.0
    %496 = vmatprep.mubr.f32.mxu0 0.0
    %497 = vmatmul.mubr.f32.gmra.mxu0 %v411
    %v498 = vpop.f32.mrf.mxu0
    %v499 = vadd.f32 %v431, %v498
    %v500 = vpop.f32.mrf.mxu0
    %501 = vdwg.mxu0
    %502 = vst [vmem:[#allocation11] sm:$0xff] %v499
    // Predicated region
    $region42: #{tpu_custom_call.1} parent=1 // pred_check
      _
    $region43: #{tpu_custom_call.1} parent=1 // pred_check_branch
      %504 = sbr.rel (0) target = $region45
    $region44: #{tpu_custom_call.1} parent=1 // pred_region
      %s506 = ssub.s32 128, 128
      %507 = vsyncadd [#allocation4], %s506
      %s509 = sshll.u32 [#allocation11], 4
      %s510 = int_to_ptr.vmem [resolvable:$true] %s509
      %512 = dma.vmem_to_hbm [thread:$0]  %s510, 128, %s5, [#allocation4]
    $region45: #{tpu_custom_call.1} parent=1 // pred_fallthru
      _
    // Predicated region
    $region46: #{tpu_custom_call.1} parent=1 // pred_check
      _
    $region47: #{tpu_custom_call.1} parent=1 // pred_check_branch
      %514 = sbr.rel (0) target = $region49
    $region48: #{tpu_custom_call.1} parent=1 // pred_region
      %515 = dma.done [#allocation4], 128
    $region49: #{tpu_custom_call.1} parent=1 // pred_fallthru
      _
    %516 = vsyncpa [#allocation3], 1
    %517 = vsyncpa [#allocation6], 1
    %518 = vsyncpa [#allocation9], 1
    %519 = vsyncpa [#allocation4], 1

// kernel: tpu_custom_call.1
$region0: #{tpu_custom_call.1}
  #allocation0 [shape = 'u32[]', space=smem, size = 0x4, offset = 0x4, fixed_abs, tag = 'smem constant byte address 0x4 - core index']
  #allocation1 [shape = 'u32[144,128]{1,0:T(1,128)}', space=vmem, size = 0x12000, scoped, tag = 'internal scratch']
  %s0 = inlined_call_operand.hbm [shape: f32[8,128], index: 0, kind: input, shape index: {}]
  %s1 = inlined_call_operand.hbm [shape: f32[128,128], index: 1, kind: input, shape index: {}]
  %s2 = inlined_call_operand.hbm [shape: f32[2,128,128], index: 2, kind: input, shape index: {}]
  %s3 = inlined_call_operand.hbm [shape: f32[128,128], index: 3, kind: input, shape index: {}]
  %s4 = inlined_call_operand.hbm [shape: f32[9,128], index: 4, kind: input, shape index: {}]
  %s5 = inlined_call_operand.hbm [shape: f32[8,128], index: 5, kind: output, shape index: {}]
  %s6 = sld [smem:[#allocation0]]
  $region50: #{tpu_custom_call.1} parent=0
    _
  %s8 = ssub.s32 1, %s6
  %s9 = scalar_select 0, %s8, %s6
  $region1: #{tpu_custom_call.1} parent=0
    #allocation2 [shape = 'u8[4096]{0}', space=vmem, size = 0x1000, scoped, tag = 'input window, operand 0, single buffered']
    #allocation3 [shape = 's32[1]{0}', space=sflag, size = 0x4, scoped, tag = 'scoped memory for tpu_custom_call.1']
    #allocation4 [shape = 's32[1]{0}', space=sflag, size = 0x4, scoped, tag = 'scoped memory for tpu_custom_call.1']
    #allocation5 [shape = 'u8[65536]{0}', space=vmem, size = 0x10000, scoped, tag = 'input window, operand 1, single buffered']
    #allocation6 [shape = 's32[1]{0}', space=sflag, size = 0x4, scoped, tag = 'scoped memory for tpu_custom_call.1']
    #allocation7 [shape = 'u8[131072]{0}', space=vmem, size = 0x20000, scoped, tag = 'input window, operand 2, single buffered']
    #allocation8 [shape = 'u8[65536]{0}', space=vmem, size = 0x10000, scoped, tag = 'input window, operand 3, single buffered']
    #allocation9 [shape = 's32[1]{0}', space=sflag, size = 0x4, scoped, tag = 'scoped memory for tpu_custom_call.1']
    #allocation10 [shape = 'u8[8192]{0}', space=vmem, size = 0x2000, scoped, tag = 'input window, operand 4, single buffered']
    #allocation11 [shape = 'u8[4096]{0}', space=vmem, size = 0x1000, scoped, tag = 'output window, operand 0, single buffered']
    %10 = vsyncpa [#allocation3], 0
    %11 = vsyncpa [#allocation6], 0
    %12 = vsyncpa [#allocation9], 0
    %13 = vsyncpa [#allocation4], 0
    // Predicated region
    $region2: #{tpu_custom_call.1} parent=1 // pred_check
      _
    $region3: #{tpu_custom_call.1} parent=1 // pred_check_branch
      %15 = sbr.rel (0) target = $region5
    $region4: #{tpu_custom_call.1} parent=1 // pred_region
      %s17 = ssub.s32 128, 128
      %18 = vsyncadd [#allocation3], %s17
      %s20 = sshll.u32 [#allocation2], 4
      %s21 = int_to_ptr.vmem [resolvable:$true] %s20
      %23 = dma.hbm_to_vmem [thread:$0]  %s0, 128, %s21, [#allocation3]
    $region5: #{tpu_custom_call.1} parent=1 // pred_fallthru
      _
    // Predicated region
    $region6: #{tpu_custom_call.1} parent=1 // pred_check
      _
    $region7: #{tpu_custom_call.1} parent=1 // pred_check_branch
      %25 = sbr.rel (0) target = $region9
    $region8: #{tpu_custom_call.1} parent=1 // pred_region
      %s27 = ssub.s32 2048, 2048
      %28 = vsyncadd [#allocation6], %s27
      %s29 = sshll.u32 [#allocation5], 4
      %s30 = int_to_ptr.vmem [resolvable:$true] %s29
      %35 = dma.hbm_to_vmem [thread:$0]  %s1, 2048, %s30, [#allocation6], 128, 128, 8
    $region9: #{tpu_custom_call.1} parent=1 // pred_fallthru
      _
    // Predicated region
    $region10: #{tpu_custom_call.1} parent=1 // pred_check
      _
    $region11: #{tpu_custom_call.1} parent=1 // pred_check_branch
      %37 = sbr.rel (0) target = $region13
    $region12: #{tpu_custom_call.1} parent=1 // pred_region
      %s39 = ssub.s32 4096, 4096
      %40 = vsyncadd [#allocation6], %s39
      %s41 = sshll.u32 [#allocation7], 4
      %s42 = int_to_ptr.vmem [resolvable:$true] %s41
      %47 = dma.hbm_to_vmem [thread:$0]  %s2, 4096, %s42, [#allocation6], 128, 128, 8
    $region13: #{tpu_custom_call.1} parent=1 // pred_fallthru
      _
    // Predicated region
    $region14: #{tpu_custom_call.1} parent=1 // pred_check
      _
    $region15: #{tpu_custom_call.1} parent=1 // pred_check_branch
      %49 = sbr.rel (0) target = $region17
    $region16: #{tpu_custom_call.1} parent=1 // pred_region
      %s51 = ssub.s32 2048, 2048
      %52 = vsyncadd [#allocation9], %s51
      %s53 = sshll.u32 [#allocation8], 4
      %s54 = int_to_ptr.vmem [resolvable:$true] %s53
      %59 = dma.hbm_to_vmem [thread:$0]  %s3, 2048, %s54, [#allocation9], 128, 128, 8
    $region17: #{tpu_custom_call.1} parent=1 // pred_fallthru
      _
    // Predicated region
    $region18: #{tpu_custom_call.1} parent=1 // pred_check
      _
    $region19: #{tpu_custom_call.1} parent=1 // pred_check_branch
      %61 = sbr.rel (0) target = $region21
    $region20: #{tpu_custom_call.1} parent=1 // pred_region
      %s63 = ssub.s32 256, 256
      %64 = vsyncadd [#allocation9], %s63
      %s65 = sshll.u32 [#allocation10], 4
      %s66 = int_to_ptr.vmem [resolvable:$true] %s65
      %71 = dma.hbm_to_vmem [thread:$0]  %s4, 256, %s66, [#allocation9], 128, 128, 8
    $region21: #{tpu_custom_call.1} parent=1 // pred_fallthru
      _
    // Predicated region
    $region22: #{tpu_custom_call.1} parent=1 // pred_check
      _
    $region23: #{tpu_custom_call.1} parent=1 // pred_check_branch
      %73 = sbr.rel (0) target = $region25
    $region24: #{tpu_custom_call.1} parent=1 // pred_region
      %74 = dma.done [#allocation3], 128
    $region25: #{tpu_custom_call.1} parent=1 // pred_fallthru
      _
    // Predicated region
    $region26: #{tpu_custom_call.1} parent=1 // pred_check
      _
    $region27: #{tpu_custom_call.1} parent=1 // pred_check_branch
      %76 = sbr.rel (0) target = $region29
    $region28: #{tpu_custom_call.1} parent=1 // pred_region
      %77 = dma.done [#allocation6], 2048
    $region29: #{tpu_custom_call.1} parent=1 // pred_fallthru
      _
    // Predicated region
    $region30: #{tpu_custom_call.1} parent=1 // pred_check
      _
    $region31: #{tpu_custom_call.1} parent=1 // pred_check_branch
      %79 = sbr.rel (0) target = $region33
    $region32: #{tpu_custom_call.1} parent=1 // pred_region
      %80 = dma.done [#allocation6], 4096
    $region33: #{tpu_custom_call.1} parent=1 // pred_fallthru
      _
    // Predicated region
    $region34: #{tpu_custom_call.1} parent=1 // pred_check
      _
    $region35: #{tpu_custom_call.1} parent=1 // pred_check_branch
      %82 = sbr.rel (0) target = $region37
    $region36: #{tpu_custom_call.1} parent=1 // pred_region
      %83 = dma.done [#allocation9], 2048
    $region37: #{tpu_custom_call.1} parent=1 // pred_fallthru
      _
    // Predicated region
    $region38: #{tpu_custom_call.1} parent=1 // pred_check
      _
    $region39: #{tpu_custom_call.1} parent=1 // pred_check_branch
      %85 = sbr.rel (0) target = $region41
    $region40: #{tpu_custom_call.1} parent=1 // pred_region
      %86 = dma.done [#allocation9], 256
    $region41: #{tpu_custom_call.1} parent=1 // pred_fallthru
      _
    %v87 = vld [vmem:[#allocation10] sm:$0xff]
    %v88 = vld [vmem:[#allocation10 + $0x8] sm:$0x1]
    %v89 = vld [vmem:[#allocation5] sm:$0xff]
    %v90 = vld [vmem:[#allocation5 + $0x8] sm:$0xff]
    %v91 = vld [vmem:[#allocation5 + $0x10] sm:$0xff]
    %v92 = vld [vmem:[#allocation5 + $0x18] sm:$0xff]
    %v93 = vld [vmem:[#allocation5 + $0x20] sm:$0xff]
    %v94 = vld [vmem:[#allocation5 + $0x28] sm:$0xff]
    %v95 = vld [vmem:[#allocation5 + $0x30] sm:$0xff]
    %v96 = vld [vmem:[#allocation5 + $0x38] sm:$0xff]
    %v97 = vld [vmem:[#allocation5 + $0x40] sm:$0xff]
    %v98 = vld [vmem:[#allocation5 + $0x48] sm:$0xff]
    %v99 = vld [vmem:[#allocation5 + $0x50] sm:$0xff]
    %v100 = vld [vmem:[#allocation5 + $0x58] sm:$0xff]
    %v101 = vld [vmem:[#allocation5 + $0x60] sm:$0xff]
    %v102 = vld [vmem:[#allocation5 + $0x68] sm:$0xff]
    %v103 = vld [vmem:[#allocation5 + $0x70] sm:$0xff]
    %v104 = vld [vmem:[#allocation5 + $0x78] sm:$0xff]
    %v105 = vld [vmem:[#allocation2] sm:$0xff]
    %v106 = vlaneseq
    %v107 = vshrl.u32 %v106, 7
    %v108 = vsub.s32 0, %v107
    %v109 = vrot.slane %v87, %v108
    %110 = vmatprep.subr.mxu0 0.0
    %111 = vmatpush1.msra.mxu0 %v104
    %112 = vmatprep.subr.mxu0 0.0
    %113 = vmatpush1.msra.mxu0 %v103
    %114 = vmatprep.subr.mxu0 0.0
    %115 = vmatpush1.msra.mxu0 %v102
    %116 = vmatprep.subr.mxu0 0.0
    %117 = vmatpush1.msra.mxu0 %v101
    %118 = vmatprep.subr.mxu0 0.0
    %119 = vmatpush1.msra.mxu0 %v100
    %120 = vmatprep.subr.mxu0 0.0
    %121 = vmatpush1.msra.mxu0 %v99
    %122 = vmatprep.subr.mxu0 0.0
    %123 = vmatpush1.msra.mxu0 %v98
    %124 = vmatprep.subr.mxu0 0.0
    %125 = vmatpush1.msra.mxu0 %v97
    %126 = vmatprep.subr.mxu0 0.0
    %127 = vmatpush1.msra.mxu0 %v96
    %128 = vmatprep.subr.mxu0 0.0
    %129 = vmatpush1.msra.mxu0 %v95
    %130 = vmatprep.subr.mxu0 0.0
    %131 = vmatpush1.msra.mxu0 %v94
    %132 = vmatprep.subr.mxu0 0.0
    %133 = vmatpush1.msra.mxu0 %v93
    %134 = vmatprep.subr.mxu0 0.0
    %135 = vmatpush1.msra.mxu0 %v92
    %136 = vmatprep.subr.mxu0 0.0
    %137 = vmatpush1.msra.mxu0 %v91
    %138 = vmatprep.subr.mxu0 0.0
    %139 = vmatpush1.msra.mxu0 %v90
    %140 = vmatprep.subr.mxu0 0.0
    %141 = vmatpush1.msra.mxu0 %v89
    %142 = vmatprep.subr.mxu0 0.0
    %143 = vmatpush2.msra.mxu0 0.0
    %144 = vmatprep.subr.mxu0 0.0
    %145 = vmatpush2.msra.mxu0 0.0
    %146 = vmatprep.subr.mxu0 0.0
    %147 = vmatpush2.msra.mxu0 0.0
    %148 = vmatprep.subr.mxu0 0.0
    %149 = vmatpush2.msra.mxu0 0.0
    %150 = vmatprep.subr.mxu0 0.0
    %151 = vmatpush2.msra.mxu0 0.0
    %152 = vmatprep.subr.mxu0 0.0
    %153 = vmatpush2.msra.mxu0 0.0
    %154 = vmatprep.subr.mxu0 0.0
    %155 = vmatpush2.msra.mxu0 0.0
    %156 = vmatprep.subr.mxu0 0.0
    %157 = vmatpush2.msra.mxu0 0.0
    %158 = vmatprep.subr.mxu0 0.0
    %159 = vmatpush2.msra.mxu0 0.0
    %160 = vmatprep.subr.mxu0 0.0
    %161 = vmatpush2.msra.mxu0 0.0
    %162 = vmatprep.subr.mxu0 0.0
    %163 = vmatpush2.msra.mxu0 0.0
    %164 = vmatprep.subr.mxu0 0.0
    %165 = vmatpush2.msra.mxu0 0.0
    %166 = vmatprep.subr.mxu0 0.0
    %167 = vmatpush2.msra.mxu0 0.0
    %168 = vmatprep.subr.mxu0 0.0
    %169 = vmatpush2.msra.mxu0 0.0
    %170 = vmatprep.subr.mxu0 0.0
    %171 = vmatpush2.msra.mxu0 0.0
    %172 = vmatprep.subr.mxu0 0.0
    %173 = vmatpush2.msra.mxu0 0.0
    %174 = vmatprep.mubr.f32.mxu0 0.0
    %175 = vmatmul.mubr.f32.gmra.mxu0 %v105
    %v176 = vpop.f32.mrf.mxu0
    %v177 = vadd.f32 %v109, %v176
    %v178 = vpop.f32.mrf.mxu0
    %179 = vdwg.mxu0
    %v180 = vmax.f32 %v177, 0.0
    %v181 = vld [vmem:[#allocation7] sm:$0xff]
    %v182 = vld [vmem:[#allocation7 + $0x8] sm:$0xff]
    %v183 = vld [vmem:[#allocation7 + $0x10] sm:$0xff]
    %v184 = vld [vmem:[#allocation7 + $0x18] sm:$0xff]
    %v185 = vld [vmem:[#allocation7 + $0x20] sm:$0xff]
    %v186 = vld [vmem:[#allocation7 + $0x28] sm:$0xff]
    %v187 = vld [vmem:[#allocation7 + $0x30] sm:$0xff]
    %v188 = vld [vmem:[#allocation7 + $0x38] sm:$0xff]
    %v189 = vld [vmem:[#allocation7 + $0x40] sm:$0xff]
    %v190 = vld [vmem:[#allocation7 + $0x48] sm:$0xff]
    %v191 = vld [vmem:[#allocation7 + $0x50] sm:$0xff]
    %v192 = vld [vmem:[#allocation7 + $0x58] sm:$0xff]
    %v193 = vld [vmem:[#allocation7 + $0x60] sm:$0xff]
    %v194 = vld [vmem:[#allocation7 + $0x68] sm:$0xff]
    %v195 = vld [vmem:[#allocation7 + $0x70] sm:$0xff]
    %v196 = vld [vmem:[#allocation7 + $0x78] sm:$0xff]
    %v197 = vlaneseq
    %v198 = vshrl.u32 %v197, 7
    %v199 = vsub.s32 1, %v198
    %v200 = vrot.slane %v87, %v199
    %201 = vmatprep.subr.mxu0 0.0
    %202 = vmatpush1.msra.mxu0 %v196
    %203 = vmatprep.subr.mxu0 0.0
    %204 = vmatpush1.msra.mxu0 %v195
    %205 = vmatprep.subr.mxu0 0.0
    %206 = vmatpush1.msra.mxu0 %v194
    %207 = vmatprep.subr.mxu0 0.0
    %208 = vmatpush1.msra.mxu0 %v193
    %209 = vmatprep.subr.mxu0 0.0
    %210 = vmatpush1.msra.mxu0 %v192
    %211 = vmatprep.subr.mxu0 0.0
    %212 = vmatpush1.msra.mxu0 %v191
    %213 = vmatprep.subr.mxu0 0.0
    %214 = vmatpush1.msra.mxu0 %v190
    %215 = vmatprep.subr.mxu0 0.0
    %216 = vmatpush1.msra.mxu0 %v189
    %217 = vmatprep.subr.mxu0 0.0
    %218 = vmatpush1.msra.mxu0 %v188
    %219 = vmatprep.subr.mxu0 0.0
    %220 = vmatpush1.msra.mxu0 %v187
    %221 = vmatprep.subr.mxu0 0.0
    %222 = vmatpush1.msra.mxu0 %v186
    %223 = vmatprep.subr.mxu0 0.0
    %224 = vmatpush1.msra.mxu0 %v185
    %225 = vmatprep.subr.mxu0 0.0
    %226 = vmatpush1.msra.mxu0 %v184
    %227 = vmatprep.subr.mxu0 0.0
    %228 = vmatpush1.msra.mxu0 %v183
    %229 = vmatprep.subr.mxu0 0.0
    %230 = vmatpush1.msra.mxu0 %v182
    %231 = vmatprep.subr.mxu0 0.0
    %232 = vmatpush1.msra.mxu0 %v181
    %233 = vmatprep.subr.mxu0 0.0
    %234 = vmatpush2.msra.mxu0 0.0
    %235 = vmatprep.subr.mxu0 0.0
    %236 = vmatpush2.msra.mxu0 0.0
    %237 = vmatprep.subr.mxu0 0.0
    %238 = vmatpush2.msra.mxu0 0.0
    %239 = vmatprep.subr.mxu0 0.0
    %240 = vmatpush2.msra.mxu0 0.0
    %241 = vmatprep.subr.mxu0 0.0
    %242 = vmatpush2.msra.mxu0 0.0
    %243 = vmatprep.subr.mxu0 0.0
    %244 = vmatpush2.msra.mxu0 0.0
    %245 = vmatprep.subr.mxu0 0.0
    %246 = vmatpush2.msra.mxu0 0.0
    %247 = vmatprep.subr.mxu0 0.0
    %248 = vmatpush2.msra.mxu0 0.0
    %249 = vmatprep.subr.mxu0 0.0
    %250 = vmatpush2.msra.mxu0 0.0
    %251 = vmatprep.subr.mxu0 0.0
    %252 = vmatpush2.msra.mxu0 0.0
    %253 = vmatprep.subr.mxu0 0.0
    %254 = vmatpush2.msra.mxu0 0.0
    %255 = vmatprep.subr.mxu0 0.0
    %256 = vmatpush2.msra.mxu0 0.0
    %257 = vmatprep.subr.mxu0 0.0
    %258 = vmatpush2.msra.mxu0 0.0
    %259 = vmatprep.subr.mxu0 0.0
    %260 = vmatpush2.msra.mxu0 0.0
    %261 = vmatprep.subr.mxu0 0.0
    %262 = vmatpush2.msra.mxu0 0.0
    %263 = vmatprep.subr.mxu0 0.0
    %264 = vmatpush2.msra.mxu0 0.0
    %265 = vmatprep.mubr.f32.mxu0 0.0
    %266 = vmatmul.mubr.f32.gmra.mxu0 %v180
    %v267 = vpop.f32.mrf.mxu0
    %v268 = vadd.f32 %v200, %v267
    %v269 = vpop.f32.mrf.mxu0
    %270 = vdwg.mxu0
    %271 = vadd.xlane.f32.xlu0 %v268
    %v272 = vpop.xlane.xlu0 %271
    %v273 = vmul.f32 %v272, 0.03125
    %v274 = vsub.f32 %v268, %v273
    %v275 = vlaneseq
    %v276 = vshrl.u32 %v275, 7
    %v277 = vsub.s32 0, %v276
    %v278 = vrot.slane %v88, %v277
    %v279 = vmul.f32 %v274, %v278
    %v280 = vmul.f32 %v279, %v279
    %281 = vadd.xlane.f32.xlu0 %v280
    %v282 = vpop.xlane.xlu0 %281
    %v283 = vmul.f32 %v282, 0.03125
    %v284 = vadd.f32 %v283, 1e-05
    %v285 = vrsqrt.pop %v284
    %v286 = vmul.f32 %v279, %v285
    %v287 = vlaneseq
    %v288 = vshrl.u32 %v287, 7
    %v289 = vsub.s32 2, %v288
    %v290 = vrot.slane %v87, %v289
    %v291 = vmul.f32 %v286, %v290
    %v292 = vlaneseq
    %v293 = vshrl.u32 %v292, 7
    %v294 = vsub.s32 3, %v293
    %v295 = vrot.slane %v87, %v294
    %v296 = vadd.f32 %v291, %v295
    %v297 = vmax.f32 %v296, 0.0
    %s298 = scalar_lea.vmem [#allocation7], 128
    %v299 = vld [vmem:[%s298] sm:$0xff]
    %v300 = vld [vmem:[%s298 + $0x8] sm:$0xff]
    %v301 = vld [vmem:[%s298 + $0x10] sm:$0xff]
    %v302 = vld [vmem:[%s298 + $0x18] sm:$0xff]
    %v303 = vld [vmem:[%s298 + $0x20] sm:$0xff]
    %v304 = vld [vmem:[%s298 + $0x28] sm:$0xff]
    %v305 = vld [vmem:[%s298 + $0x30] sm:$0xff]
    %v306 = vld [vmem:[%s298 + $0x38] sm:$0xff]
    %v307 = vld [vmem:[%s298 + $0x40] sm:$0xff]
    %v308 = vld [vmem:[%s298 + $0x48] sm:$0xff]
    %v309 = vld [vmem:[%s298 + $0x50] sm:$0xff]
    %v310 = vld [vmem:[%s298 + $0x58] sm:$0xff]
    %v311 = vld [vmem:[%s298 + $0x60] sm:$0xff]
    %v312 = vld [vmem:[%s298 + $0x68] sm:$0xff]
    %v313 = vld [vmem:[%s298 + $0x70] sm:$0xff]
    %v314 = vld [vmem:[%s298 + $0x78] sm:$0xff]
    %v315 = vlaneseq
    %v316 = vshrl.u32 %v315, 7
    %v317 = vsub.s32 4, %v316
    %v318 = vrot.slane %v87, %v317
    %319 = vmatprep.subr.mxu0 0.0
    %320 = vmatpush1.msra.mxu0 %v314
    %321 = vmatprep.subr.mxu0 0.0
    %322 = vmatpush1.msra.mxu0 %v313
    %323 = vmatprep.subr.mxu0 0.0
    %324 = vmatpush1.msra.mxu0 %v312
    %325 = vmatprep.subr.mxu0 0.0
    %326 = vmatpush1.msra.mxu0 %v311
    %327 = vmatprep.subr.mxu0 0.0
    %328 = vmatpush1.msra.mxu0 %v310
    %329 = vmatprep.subr.mxu0 0.0
    %330 = vmatpush1.msra.mxu0 %v309
    %331 = vmatprep.subr.mxu0 0.0
    %332 = vmatpush1.msra.mxu0 %v308
    %333 = vmatprep.subr.mxu0 0.0
    %334 = vmatpush1.msra.mxu0 %v307
    %335 = vmatprep.subr.mxu0 0.0
    %336 = vmatpush1.msra.mxu0 %v306
    %337 = vmatprep.subr.mxu0 0.0
    %338 = vmatpush1.msra.mxu0 %v305
    %339 = vmatprep.subr.mxu0 0.0
    %340 = vmatpush1.msra.mxu0 %v304
    %341 = vmatprep.subr.mxu0 0.0
    %342 = vmatpush1.msra.mxu0 %v303
    %343 = vmatprep.subr.mxu0 0.0
    %344 = vmatpush1.msra.mxu0 %v302
    %345 = vmatprep.subr.mxu0 0.0
    %346 = vmatpush1.msra.mxu0 %v301
    %347 = vmatprep.subr.mxu0 0.0
    %348 = vmatpush1.msra.mxu0 %v300
    %349 = vmatprep.subr.mxu0 0.0
    %350 = vmatpush1.msra.mxu0 %v299
    %351 = vmatprep.subr.mxu0 0.0
    %352 = vmatpush2.msra.mxu0 0.0
    %353 = vmatprep.subr.mxu0 0.0
    %354 = vmatpush2.msra.mxu0 0.0
    %355 = vmatprep.subr.mxu0 0.0
    %356 = vmatpush2.msra.mxu0 0.0
    %357 = vmatprep.subr.mxu0 0.0
    %358 = vmatpush2.msra.mxu0 0.0
    %359 = vmatprep.subr.mxu0 0.0
    %360 = vmatpush2.msra.mxu0 0.0
    %361 = vmatprep.subr.mxu0 0.0
    %362 = vmatpush2.msra.mxu0 0.0
    %363 = vmatprep.subr.mxu0 0.0
    %364 = vmatpush2.msra.mxu0 0.0
    %365 = vmatprep.subr.mxu0 0.0
    %366 = vmatpush2.msra.mxu0 0.0
    %367 = vmatprep.subr.mxu0 0.0
    %368 = vmatpush2.msra.mxu0 0.0
    %369 = vmatprep.subr.mxu0 0.0
    %370 = vmatpush2.msra.mxu0 0.0
    %371 = vmatprep.subr.mxu0 0.0
    %372 = vmatpush2.msra.mxu0 0.0
    %373 = vmatprep.subr.mxu0 0.0
    %374 = vmatpush2.msra.mxu0 0.0
    %375 = vmatprep.subr.mxu0 0.0
    %376 = vmatpush2.msra.mxu0 0.0
    %377 = vmatprep.subr.mxu0 0.0
    %378 = vmatpush2.msra.mxu0 0.0
    %379 = vmatprep.subr.mxu0 0.0
    %380 = vmatpush2.msra.mxu0 0.0
    %381 = vmatprep.subr.mxu0 0.0
    %382 = vmatpush2.msra.mxu0 0.0
    %383 = vmatprep.mubr.f32.mxu0 0.0
    %384 = vmatmul.mubr.f32.gmra.mxu0 %v297
    %v385 = vpop.f32.mrf.mxu0
    %v386 = vadd.f32 %v318, %v385
    %v387 = vpop.f32.mrf.mxu0
    %388 = vdwg.mxu0
    %389 = vadd.xlane.f32.xlu0 %v386
    %v390 = vpop.xlane.xlu0 %389
    %v391 = vmul.f32 %v390, 0.03125
    %v392 = vsub.f32 %v386, %v391
    %v393 = vmul.f32 %v392, %v278
    %v394 = vmul.f32 %v393, %v393
    %395 = vadd.xlane.f32.xlu0 %v394
    %v396 = vpop.xlane.xlu0 %395
    %v397 = vmul.f32 %v396, 0.03125
    %v398 = vadd.f32 %v397, 1e-05
    %v399 = vrsqrt.pop %v398
    %v400 = vmul.f32 %v393, %v399
    %v401 = vlaneseq
    %v402 = vshrl.u32 %v401, 7
    %v403 = vsub.s32 5, %v402
    %v404 = vrot.slane %v87, %v403
    %v405 = vmul.f32 %v400, %v404
    %v406 = vlaneseq
    %v407 = vshrl.u32 %v406, 7
    %v408 = vsub.s32 6, %v407
    %v409 = vrot.slane %v87, %v408
    %v410 = vadd.f32 %v405, %v409
    %v411 = vmax.f32 %v410, 0.0
    %v412 = vld [vmem:[#allocation8] sm:$0xff]
    %v413 = vld [vmem:[#allocation8 + $0x8] sm:$0xff]
    %v414 = vld [vmem:[#allocation8 + $0x10] sm:$0xff]
    %v415 = vld [vmem:[#allocation8 + $0x18] sm:$0xff]
    %v416 = vld [vmem:[#allocation8 + $0x20] sm:$0xff]
    %v417 = vld [vmem:[#allocation8 + $0x28] sm:$0xff]
    %v418 = vld [vmem:[#allocation8 + $0x30] sm:$0xff]
    %v419 = vld [vmem:[#allocation8 + $0x38] sm:$0xff]
    %v420 = vld [vmem:[#allocation8 + $0x40] sm:$0xff]
    %v421 = vld [vmem:[#allocation8 + $0x48] sm:$0xff]
    %v422 = vld [vmem:[#allocation8 + $0x50] sm:$0xff]
    %v423 = vld [vmem:[#allocation8 + $0x58] sm:$0xff]
    %v424 = vld [vmem:[#allocation8 + $0x60] sm:$0xff]
    %v425 = vld [vmem:[#allocation8 + $0x68] sm:$0xff]
    %v426 = vld [vmem:[#allocation8 + $0x70] sm:$0xff]
    %v427 = vld [vmem:[#allocation8 + $0x78] sm:$0xff]
    %v428 = vlaneseq
    %v429 = vshrl.u32 %v428, 7
    %v430 = vsub.s32 7, %v429
    %v431 = vrot.slane %v87, %v430
    %432 = vmatprep.subr.mxu0 0.0
    %433 = vmatpush1.msra.mxu0 %v427
    %434 = vmatprep.subr.mxu0 0.0
    %435 = vmatpush1.msra.mxu0 %v426
    %436 = vmatprep.subr.mxu0 0.0
    %437 = vmatpush1.msra.mxu0 %v425
    %438 = vmatprep.subr.mxu0 0.0
    %439 = vmatpush1.msra.mxu0 %v424
    %440 = vmatprep.subr.mxu0 0.0
    %441 = vmatpush1.msra.mxu0 %v423
    %442 = vmatprep.subr.mxu0 0.0
    %443 = vmatpush1.msra.mxu0 %v422
    %444 = vmatprep.subr.mxu0 0.0
    %445 = vmatpush1.msra.mxu0 %v421
    %446 = vmatprep.subr.mxu0 0.0
    %447 = vmatpush1.msra.mxu0 %v420
    %448 = vmatprep.subr.mxu0 0.0
    %449 = vmatpush1.msra.mxu0 %v419
    %450 = vmatprep.subr.mxu0 0.0
    %451 = vmatpush1.msra.mxu0 %v418
    %452 = vmatprep.subr.mxu0 0.0
    %453 = vmatpush1.msra.mxu0 %v417
    %454 = vmatprep.subr.mxu0 0.0
    %455 = vmatpush1.msra.mxu0 %v416
    %456 = vmatprep.subr.mxu0 0.0
    %457 = vmatpush1.msra.mxu0 %v415
    %458 = vmatprep.subr.mxu0 0.0
    %459 = vmatpush1.msra.mxu0 %v414
    %460 = vmatprep.subr.mxu0 0.0
    %461 = vmatpush1.msra.mxu0 %v413
    %462 = vmatprep.subr.mxu0 0.0
    %463 = vmatpush1.msra.mxu0 %v412
    %464 = vmatprep.subr.mxu0 0.0
    %465 = vmatpush2.msra.mxu0 0.0
    %466 = vmatprep.subr.mxu0 0.0
    %467 = vmatpush2.msra.mxu0 0.0
    %468 = vmatprep.subr.mxu0 0.0
    %469 = vmatpush2.msra.mxu0 0.0
    %470 = vmatprep.subr.mxu0 0.0
    %471 = vmatpush2.msra.mxu0 0.0
    %472 = vmatprep.subr.mxu0 0.0
    %473 = vmatpush2.msra.mxu0 0.0
    %474 = vmatprep.subr.mxu0 0.0
    %475 = vmatpush2.msra.mxu0 0.0
    %476 = vmatprep.subr.mxu0 0.0
    %477 = vmatpush2.msra.mxu0 0.0
    %478 = vmatprep.subr.mxu0 0.0
    %479 = vmatpush2.msra.mxu0 0.0
    %480 = vmatprep.subr.mxu0 0.0
    %481 = vmatpush2.msra.mxu0 0.0
    %482 = vmatprep.subr.mxu0 0.0
    %483 = vmatpush2.msra.mxu0 0.0
    %484 = vmatprep.subr.mxu0 0.0
    %485 = vmatpush2.msra.mxu0 0.0
    %486 = vmatprep.subr.mxu0 0.0
    %487 = vmatpush2.msra.mxu0 0.0
    %488 = vmatprep.subr.mxu0 0.0
    %489 = vmatpush2.msra.mxu0 0.0
    %490 = vmatprep.subr.mxu0 0.0
    %491 = vmatpush2.msra.mxu0 0.0
    %492 = vmatprep.subr.mxu0 0.0
    %493 = vmatpush2.msra.mxu0 0.0
    %494 = vmatprep.subr.mxu0 0.0
    %495 = vmatpush2.msra.mxu0 0.0
    %496 = vmatprep.mubr.f32.mxu0 0.0
    %497 = vmatmul.mubr.f32.gmra.mxu0 %v411
    %v498 = vpop.f32.mrf.mxu0
    %v499 = vadd.f32 %v431, %v498
    %v500 = vpop.f32.mrf.mxu0
    %501 = vdwg.mxu0
    %502 = vst [vmem:[#allocation11] sm:$0xff] %v499
    // Predicated region
    $region42: #{tpu_custom_call.1} parent=1 // pred_check
      _
    $region43: #{tpu_custom_call.1} parent=1 // pred_check_branch
      %504 = sbr.rel (0) target = $region45
    $region44: #{tpu_custom_call.1} parent=1 // pred_region
      %s506 = ssub.s32 128, 128
      %507 = vsyncadd [#allocation4], %s506
      %s509 = sshll.u32 [#allocation11], 4
      %s510 = int_to_ptr.vmem [resolvable:$true] %s509
      %512 = dma.vmem_to_hbm [thread:$0]  %s510, 128, %s5, [#allocation4]
    $region45: #{tpu_custom_call.1} parent=1 // pred_fallthru
      _
    // Predicated region
    $region46: #{tpu_custom_call.1} parent=1 // pred_check
      _
    $region47: #{tpu_custom_call.1} parent=1 // pred_check_branch
      %514 = sbr.rel (0) target = $region49
    $region48: #{tpu_custom_call.1} parent=1 // pred_region
      %515 = dma.done [#allocation4], 128
    $region49: #{tpu_custom_call.1} parent=1 // pred_fallthru
      _
    %516 = vsyncpa [#allocation3], 1
    %517 = vsyncpa [#allocation6], 1
    %518 = vsyncpa [#allocation9], 1
    %519 = vsyncpa [#allocation4], 1

</llo_original>
